<compile_context>
chip_gen: v5e
topology: v5e:2x2
jax: 0.10.0
libtpu: 0.0.40
codegen_flags: <defaults>
</compile_context>

<pallas_src>
import functools
import math

import jax
import jax.numpy as jnp
import numpy as np
from jax.experimental import pallas as pl
from jax.experimental.pallas import tpu as pltpu


# ---------------------------------------------------------------------------
# Fused Pallas kernel: conv1+ReLU -> conv2+ReLU -> flatten -> linear
# ---------------------------------------------------------------------------
def _encoder_kernel(x_ref, t1_ref, b1_ref, t2_ref, b2_ref, wl_ref, bl_ref,
                    o_ref, a1_ref, a2_ref, *, kh):
    # Layouts: x_ref (H, B, W*C0), a1 (Ho1, B, Wo1*C1), a2 (Ho2, B, Wo2*C2).
    # B == 8 so every reshape below only regroups whole sublane tiles (free).
    wc0 = x_ref.shape[2]
    ho1, bb, wc1 = a1_ref.shape
    ho2, _, wc2 = a2_ref.shape

    # ---- conv1 + ReLU: kh accumulated MXU matmuls vs. block-Toeplitz weights.
    acc = jnp.dot(x_ref[0:ho1].reshape(ho1 * bb, wc0), t1_ref[0],
                  preferred_element_type=jnp.float32)
    for ky in range(1, kh):
        acc += jnp.dot(x_ref[ky:ky + ho1].reshape(ho1 * bb, wc0), t1_ref[ky],
                       preferred_element_type=jnp.float32)
    a1_ref[...] = jnp.maximum(acc + b1_ref[...], 0.0).reshape(
        ho1, bb, wc1).astype(a1_ref.dtype)

    # ---- conv2 + ReLU (same structure, reads a1 straight from VMEM).
    acc = jnp.dot(a1_ref[0:ho2].reshape(ho2 * bb, wc1), t2_ref[0],
                  preferred_element_type=jnp.float32)
    for ky in range(1, kh):
        acc += jnp.dot(a1_ref[ky:ky + ho2].reshape(ho2 * bb, wc1), t2_ref[ky],
                       preferred_element_type=jnp.float32)
    a2_ref[...] = jnp.maximum(acc + b2_ref[...], 0.0).reshape(
        ho2, bb, wc2).astype(a2_ref.dtype)

    # ---- flatten (H, W, C order) + Linear: realised as ho2 accumulated
    # matmuls against the row-split weight; no sublane->lane reshape/concat.
    acc = jnp.dot(a2_ref[0], wl_ref[0], preferred_element_type=jnp.float32)
    for oy in range(1, ho2):
        acc += jnp.dot(a2_ref[oy], wl_ref[oy], preferred_element_type=jnp.float32)
    o_ref[...] = acc + bl_ref[...]


# ---------------------------------------------------------------------------
# Host-side parameter re-layout
# ---------------------------------------------------------------------------
def _toeplitz(w_hwio, w_in):
    """HWIO conv kernel -> per-ky block-Toeplitz matrix (w_in*cin, wo*cout)
    over the merged (W*C) lane axis."""
    kh, kw, cin, cout = w_hwio.shape
    wo = w_in - kw + 1
    t = np.zeros((kh, w_in * cin, wo * cout), np.float32)
    wnp = np.asarray(w_hwio, np.float32)
    for ky in range(kh):
        blk = wnp[ky].reshape(kw * cin, cout)           # rows = kx*cin + ci
        for ox in range(wo):
            t[ky, ox * cin:(ox + kw) * cin, ox * cout:(ox + 1) * cout] = blk
    return t


def prepare_params(conv_hwio, lin_w, lin_b, conv_out_chw, in_width):
    """Convs -> bf16 block-Toeplitz mats + tiled f32 bias rows; Linear weight
    permuted from PyTorch's (C,H,W) flatten order to the kernel's (H, W*C)
    row-split order and cast to bf16."""
    c2, ho2, wo2 = conv_out_chw
    ts, bs = [], []
    w_cur = in_width
    for (w, b) in conv_hwio:
        kh, kw, cin, cout = w.shape
        wo = w_cur - kw + 1
        ts.append(jnp.asarray(_toeplitz(w, w_cur), jnp.bfloat16))
        bs.append(jnp.asarray(np.tile(np.asarray(b, np.float32), wo))[None, :])
        w_cur = wo
    code = lin_w.shape[1]
    wl = jnp.asarray(lin_w, jnp.float32).reshape(c2, ho2, wo2, code)
    wl = jnp.transpose(wl, (1, 2, 0, 3)).reshape(ho2, wo2 * c2, code)
    return {"t1": ts[0], "b1": bs[0], "t2": ts[1], "b2": bs[1],
            "wl": wl.astype(jnp.bfloat16),
            "bl": jnp.asarray(lin_b, jnp.float32).reshape(1, code)}


# ---------------------------------------------------------------------------
# Wrapper
# ---------------------------------------------------------------------------
@functools.partial(jax.jit, static_argnames=("block_b",))
def encoder_forward(x_nchw, params, *, block_b=8):
    n, c0, h, w = x_nchw.shape
    assert n % block_b == 0 and block_b % 8 == 0, "batch block must be a multiple of 8"
    # NCHW -> (H, N, W*C0): batch on sublanes, W*C merged on the lane axis.
    x = jnp.transpose(x_nchw, (2, 0, 3, 1)).reshape(h, n, w * c0).astype(jnp.bfloat16)

    t1, b1, t2, b2, wl, bl = (params[k] for k in ("t1", "b1", "t2", "b2", "wl", "bl"))
    kh = t1.shape[0]
    wc1, wc2 = t1.shape[2], t2.shape[2]
    ho1 = h - kh + 1
    ho2 = ho1 - kh + 1
    code = wl.shape[2]

    def resident(a):
        nd = a.ndim
        return pl.BlockSpec(a.shape, lambda i: (0,) * nd)   # weights stay put

    kernel = functools.partial(_encoder_kernel, kh=kh)
    return pl.pallas_call(
        kernel,
        out_shape=jax.ShapeDtypeStruct((n, code), jnp.float32),
        grid=(n // block_b,),                                 # batch blocks on the grid
        in_specs=[
            pl.BlockSpec((h, block_b, w * c0), lambda i: (0, i, 0)),
            resident(t1), resident(b1), resident(t2), resident(b2),
            resident(wl), resident(bl),
        ],
        out_specs=pl.BlockSpec((block_b, code), lambda i: (i, 0)),
        scratch_shapes=[
            pltpu.VMEM((ho1, block_b, wc1), jnp.bfloat16),    # conv1 activation
            pltpu.VMEM((ho2, block_b, wc2), jnp.bfloat16),    # conv2 activation
        ],
        compiler_params=pltpu.CompilerParams(
            dimension_semantics=("parallel",)),               # >=2 steps -> megacore
    )(x, t1, b1, t2, b2, wl, bl)


# ---------------------------------------------------------------------------
# Pure-JAX reference (PyTorch semantics: NCHW conv, (C,H,W) flatten), f32 exact.
# ---------------------------------------------------------------------------
def reference_forward(x_nchw, conv_hwio, lin_w, lin_b):
    x = x_nchw
    for (w, b) in conv_hwio:
        x = jax.lax.conv_general_dilated(
            x, w, (1, 1), "VALID",
            dimension_numbers=("NCHW", "HWIO", "NCHW"),
            precision=jax.lax.Precision.HIGHEST)
        x = jnp.maximum(x + b.reshape(1, -1, 1, 1), 0.0)
    x = x.reshape(x.shape[0], -1)                             # nn.Flatten on NCHW
    return jnp.dot(x, lin_w, precision=jax.lax.Precision.HIGHEST) + lin_b


if __name__ == "__main__":
    batch = 16                         # 2 grid steps of 8 images each
    block_b = 8
    channels = [4, 8, 16]              # conv channel progression
    shape = (4, 16, 16)                # DalleManifoldAutoencoder `shape` = (C, H, W)
    vocab_size = 128                   # spec default vocab_size (encoder code size)
    ksize = 5

    key = jax.random.PRNGKey(0)
    keys = jax.random.split(key, 2 * (len(channels) - 1) + 3)

    conv_params = []
    h, w = shape[1], shape[2]
    for i in range(len(channels) - 1):
        cin, cout = channels[i], channels[i + 1]
        wk = jax.random.normal(keys[2 * i], (ksize, ksize, cin, cout),
                               jnp.float32) * (1.0 / math.sqrt(cin * ksize * ksize))
        bk = jax.random.normal(keys[2 * i + 1], (cout,), jnp.float32) * 0.01
        conv_params.append((wk, bk))
        h, w = h - ksize + 1, w - ksize + 1

    feat = channels[-1] * h * w        # math.prod(encoder conv output shape)
    lin_w = jax.random.normal(keys[-3], (feat, vocab_size),
                              jnp.float32) * (1.0 / math.sqrt(feat))
    lin_b = jax.random.normal(keys[-2], (vocab_size,), jnp.float32) * 0.01

    x = jax.random.normal(keys[-1], (batch, *shape), jnp.float32)   # NCHW input

    kparams = prepare_params(conv_params, lin_w, lin_b,
                             (channels[-1], h, w), shape[2])
    out = jax.block_until_ready(encoder_forward(x, kparams, block_b=block_b))
    assert out.shape == (batch, vocab_size)

    ref = jax.block_until_ready(reference_forward(x, conv_params, lin_w, lin_b))
    # Kernel runs bf16 operands with f32 MXU accumulation vs. the HIGHEST-
    # precision f32 reference; tolerance sized for bf16 input/activation rounding.
    np.testing.assert_allclose(np.asarray(out), np.asarray(ref), rtol=3e-2, atol=3e-2)

    print("KERNEL_OK")
</pallas_src>

<mosaic_0001>
module attributes {stable_mosaic.version = 11 : i64} {
  func.func @_encoder_kernel(%arg0: i32, %arg1: memref<16x8x64xbf16, #tpu.memory_space<vmem>>, %arg2: memref<5x64x96xbf16, #tpu.memory_space<vmem>>, %arg3: memref<1x96xf32, #tpu.memory_space<vmem>>, %arg4: memref<5x96x128xbf16, #tpu.memory_space<vmem>>, %arg5: memref<1x128xf32, #tpu.memory_space<vmem>>, %arg6: memref<8x128x128xbf16, #tpu.memory_space<vmem>>, %arg7: memref<1x128xf32, #tpu.memory_space<vmem>>, %arg8: memref<8x128xf32, #tpu.memory_space<vmem>>, %arg9: memref<12x8x96xbf16, #tpu.memory_space<vmem>>, %arg10: memref<8x8x128xbf16, #tpu.memory_space<vmem>>) attributes {dimension_semantics = [#tpu.dimension_semantics<parallel>], iteration_bounds = array<i64: 2>, scalar_prefetch = 0 : i64, scratch_operands = 2 : i64, tpu.core_type = #tpu.core_type<tc>, window_params = [{transform_indices = @transform_0, window_bounds = array<i64: 16, 8, 64>}, {pipeline_mode = #tpu.pipeline_mode<synchronous>, transform_indices = @transform_1, window_bounds = array<i64: 5, 64, 96>}, {pipeline_mode = #tpu.pipeline_mode<synchronous>, transform_indices = @transform_2, window_bounds = array<i64: 1, 96>}, {pipeline_mode = #tpu.pipeline_mode<synchronous>, transform_indices = @transform_3, window_bounds = array<i64: 5, 96, 128>}, {pipeline_mode = #tpu.pipeline_mode<synchronous>, transform_indices = @transform_4, window_bounds = array<i64: 1, 128>}, {pipeline_mode = #tpu.pipeline_mode<synchronous>, transform_indices = @transform_5, window_bounds = array<i64: 8, 128, 128>}, {pipeline_mode = #tpu.pipeline_mode<synchronous>, transform_indices = @transform_6, window_bounds = array<i64: 1, 128>}, {transform_indices = @transform_7, window_bounds = array<i64: 8, 128>}]} {
    %c0 = arith.constant 0 : index
    %c0_0 = arith.constant 0 : index
    %c0_1 = arith.constant 0 : index
    %0 = vector.load %arg1[%c0, %c0_0, %c0_1] : memref<16x8x64xbf16, #tpu.memory_space<vmem>>, vector<12x8x64xbf16>
    %1 = vector.shape_cast %0 : vector<12x8x64xbf16> to vector<96x64xbf16>
    %c0_2 = arith.constant 0 : index
    %c0_3 = arith.constant 0 : index
    %c0_4 = arith.constant 0 : index
    %2 = vector.load %arg2[%c0_2, %c0_3, %c0_4] : memref<5x64x96xbf16, #tpu.memory_space<vmem>>, vector<1x64x96xbf16>
    %3 = vector.shape_cast %2 : vector<1x64x96xbf16> to vector<64x96xbf16>
    %cst = arith.constant dense<0.000000e+00> : vector<96x96xf32>
    %4 = tpu.matmul %1, %3, %cst {dimension_numbers = #tpu.dot_dimension_numbers<[1], [0], [0], [1], [0, 0, 1, 1], [], []>} : vector<96x64xbf16>, vector<64x96xbf16>, vector<96x96xf32> -> vector<96x96xf32>
    %c1 = arith.constant 1 : index
    %c0_5 = arith.constant 0 : index
    %c0_6 = arith.constant 0 : index
    %5 = vector.load %arg1[%c1, %c0_5, %c0_6] : memref<16x8x64xbf16, #tpu.memory_space<vmem>>, vector<12x8x64xbf16>
    %6 = vector.shape_cast %5 : vector<12x8x64xbf16> to vector<96x64xbf16>
    %c1_7 = arith.constant 1 : index
    %c0_8 = arith.constant 0 : index
    %c0_9 = arith.constant 0 : index
    %7 = vector.load %arg2[%c1_7, %c0_8, %c0_9] : memref<5x64x96xbf16, #tpu.memory_space<vmem>>, vector<1x64x96xbf16>
    %8 = vector.shape_cast %7 : vector<1x64x96xbf16> to vector<64x96xbf16>
    %cst_10 = arith.constant dense<0.000000e+00> : vector<96x96xf32>
    %9 = tpu.matmul %6, %8, %cst_10 {dimension_numbers = #tpu.dot_dimension_numbers<[1], [0], [0], [1], [0, 0, 1, 1], [], []>} : vector<96x64xbf16>, vector<64x96xbf16>, vector<96x96xf32> -> vector<96x96xf32>
    %10 = arith.addf %4, %9 : vector<96x96xf32>
    %c2 = arith.constant 2 : index
    %c0_11 = arith.constant 0 : index
    %c0_12 = arith.constant 0 : index
    %11 = vector.load %arg1[%c2, %c0_11, %c0_12] : memref<16x8x64xbf16, #tpu.memory_space<vmem>>, vector<12x8x64xbf16>
    %12 = vector.shape_cast %11 : vector<12x8x64xbf16> to vector<96x64xbf16>
    %c2_13 = arith.constant 2 : index
    %c0_14 = arith.constant 0 : index
    %c0_15 = arith.constant 0 : index
    %13 = vector.load %arg2[%c2_13, %c0_14, %c0_15] : memref<5x64x96xbf16, #tpu.memory_space<vmem>>, vector<1x64x96xbf16>
    %14 = vector.shape_cast %13 : vector<1x64x96xbf16> to vector<64x96xbf16>
    %cst_16 = arith.constant dense<0.000000e+00> : vector<96x96xf32>
    %15 = tpu.matmul %12, %14, %cst_16 {dimension_numbers = #tpu.dot_dimension_numbers<[1], [0], [0], [1], [0, 0, 1, 1], [], []>} : vector<96x64xbf16>, vector<64x96xbf16>, vector<96x96xf32> -> vector<96x96xf32>
    %16 = arith.addf %10, %15 : vector<96x96xf32>
    %c3 = arith.constant 3 : index
    %c0_17 = arith.constant 0 : index
    %c0_18 = arith.constant 0 : index
    %17 = vector.load %arg1[%c3, %c0_17, %c0_18] : memref<16x8x64xbf16, #tpu.memory_space<vmem>>, vector<12x8x64xbf16>
    %18 = vector.shape_cast %17 : vector<12x8x64xbf16> to vector<96x64xbf16>
    %c3_19 = arith.constant 3 : index
    %c0_20 = arith.constant 0 : index
    %c0_21 = arith.constant 0 : index
    %19 = vector.load %arg2[%c3_19, %c0_20, %c0_21] : memref<5x64x96xbf16, #tpu.memory_space<vmem>>, vector<1x64x96xbf16>
    %20 = vector.shape_cast %19 : vector<1x64x96xbf16> to vector<64x96xbf16>
    %cst_22 = arith.constant dense<0.000000e+00> : vector<96x96xf32>
    %21 = tpu.matmul %18, %20, %cst_22 {dimension_numbers = #tpu.dot_dimension_numbers<[1], [0], [0], [1], [0, 0, 1, 1], [], []>} : vector<96x64xbf16>, vector<64x96xbf16>, vector<96x96xf32> -> vector<96x96xf32>
    %22 = arith.addf %16, %21 : vector<96x96xf32>
    %c4 = arith.constant 4 : index
    %c0_23 = arith.constant 0 : index
    %c0_24 = arith.constant 0 : index
    %23 = vector.load %arg1[%c4, %c0_23, %c0_24] : memref<16x8x64xbf16, #tpu.memory_space<vmem>>, vector<12x8x64xbf16>
    %24 = vector.shape_cast %23 : vector<12x8x64xbf16> to vector<96x64xbf16>
    %c4_25 = arith.constant 4 : index
    %c0_26 = arith.constant 0 : index
    %c0_27 = arith.constant 0 : index
    %25 = vector.load %arg2[%c4_25, %c0_26, %c0_27] : memref<5x64x96xbf16, #tpu.memory_space<vmem>>, vector<1x64x96xbf16>
    %26 = vector.shape_cast %25 : vector<1x64x96xbf16> to vector<64x96xbf16>
    %cst_28 = arith.constant dense<0.000000e+00> : vector<96x96xf32>
    %27 = tpu.matmul %24, %26, %cst_28 {dimension_numbers = #tpu.dot_dimension_numbers<[1], [0], [0], [1], [0, 0, 1, 1], [], []>} : vector<96x64xbf16>, vector<64x96xbf16>, vector<96x96xf32> -> vector<96x96xf32>
    %28 = arith.addf %22, %27 : vector<96x96xf32>
    %c0_29 = arith.constant 0 : index
    %c0_30 = arith.constant 0 : index
    %29 = vector.load %arg3[%c0_29, %c0_30] : memref<1x96xf32, #tpu.memory_space<vmem>>, vector<1x96xf32>
    %30 = vector.broadcast %29 : vector<1x96xf32> to vector<96x96xf32>
    %31 = arith.addf %28, %30 : vector<96x96xf32>
    %cst_31 = arith.constant 0.000000e+00 : f32
    %32 = vector.broadcast %cst_31 : f32 to vector<96x96xf32>
    %33 = arith.maximumf %31, %32 : vector<96x96xf32>
    %34 = vector.shape_cast %33 : vector<96x96xf32> to vector<12x8x96xf32>
    %35 = arith.truncf %34 : vector<12x8x96xf32> to vector<12x8x96xbf16>
    %c0_32 = arith.constant 0 : index
    %c0_33 = arith.constant 0 : index
    %c0_34 = arith.constant 0 : index
    %36 = vector.load %arg9[%c0_32, %c0_33, %c0_34] : memref<12x8x96xbf16, #tpu.memory_space<vmem>>, vector<12x8x96xbf16>
    tpu.vector_store %arg9[%c0_32, %c0_33, %c0_34], %35 {strides = array<i32>} : memref<12x8x96xbf16, #tpu.memory_space<vmem>>, vector<12x8x96xbf16>,
    %c0_35 = arith.constant 0 : index
    %c0_36 = arith.constant 0 : index
    %c0_37 = arith.constant 0 : index
    %37 = vector.load %arg9[%c0_35, %c0_36, %c0_37] : memref<12x8x96xbf16, #tpu.memory_space<vmem>>, vector<8x8x96xbf16>
    %38 = vector.shape_cast %37 : vector<8x8x96xbf16> to vector<64x96xbf16>
    %c0_38 = arith.constant 0 : index
    %c0_39 = arith.constant 0 : index
    %c0_40 = arith.constant 0 : index
    %39 = vector.load %arg4[%c0_38, %c0_39, %c0_40] : memref<5x96x128xbf16, #tpu.memory_space<vmem>>, vector<1x96x128xbf16>
    %40 = vector.shape_cast %39 : vector<1x96x128xbf16> to vector<96x128xbf16>
    %cst_41 = arith.constant dense<0.000000e+00> : vector<64x128xf32>
    %41 = tpu.matmul %38, %40, %cst_41 {dimension_numbers = #tpu.dot_dimension_numbers<[1], [0], [0], [1], [0, 0, 1, 1], [], []>} : vector<64x96xbf16>, vector<96x128xbf16>, vector<64x128xf32> -> vector<64x128xf32>
    %c1_42 = arith.constant 1 : index
    %c0_43 = arith.constant 0 : index
    %c0_44 = arith.constant 0 : index
    %42 = vector.load %arg9[%c1_42, %c0_43, %c0_44] : memref<12x8x96xbf16, #tpu.memory_space<vmem>>, vector<8x8x96xbf16>
    %43 = vector.shape_cast %42 : vector<8x8x96xbf16> to vector<64x96xbf16>
    %c1_45 = arith.constant 1 : index
    %c0_46 = arith.constant 0 : index
    %c0_47 = arith.constant 0 : index
    %44 = vector.load %arg4[%c1_45, %c0_46, %c0_47] : memref<5x96x128xbf16, #tpu.memory_space<vmem>>, vector<1x96x128xbf16>
    %45 = vector.shape_cast %44 : vector<1x96x128xbf16> to vector<96x128xbf16>
    %cst_48 = arith.constant dense<0.000000e+00> : vector<64x128xf32>
    %46 = tpu.matmul %43, %45, %cst_48 {dimension_numbers = #tpu.dot_dimension_numbers<[1], [0], [0], [1], [0, 0, 1, 1], [], []>} : vector<64x96xbf16>, vector<96x128xbf16>, vector<64x128xf32> -> vector<64x128xf32>
    %47 = arith.addf %41, %46 : vector<64x128xf32>
    %c2_49 = arith.constant 2 : index
    %c0_50 = arith.constant 0 : index
    %c0_51 = arith.constant 0 : index
    %48 = vector.load %arg9[%c2_49, %c0_50, %c0_51] : memref<12x8x96xbf16, #tpu.memory_space<vmem>>, vector<8x8x96xbf16>
    %49 = vector.shape_cast %48 : vector<8x8x96xbf16> to vector<64x96xbf16>
    %c2_52 = arith.constant 2 : index
    %c0_53 = arith.constant 0 : index
    %c0_54 = arith.constant 0 : index
    %50 = vector.load %arg4[%c2_52, %c0_53, %c0_54] : memref<5x96x128xbf16, #tpu.memory_space<vmem>>, vector<1x96x128xbf16>
    %51 = vector.shape_cast %50 : vector<1x96x128xbf16> to vector<96x128xbf16>
    %cst_55 = arith.constant dense<0.000000e+00> : vector<64x128xf32>
    %52 = tpu.matmul %49, %51, %cst_55 {dimension_numbers = #tpu.dot_dimension_numbers<[1], [0], [0], [1], [0, 0, 1, 1], [], []>} : vector<64x96xbf16>, vector<96x128xbf16>, vector<64x128xf32> -> vector<64x128xf32>
    %53 = arith.addf %47, %52 : vector<64x128xf32>
    %c3_56 = arith.constant 3 : index
    %c0_57 = arith.constant 0 : index
    %c0_58 = arith.constant 0 : index
    %54 = vector.load %arg9[%c3_56, %c0_57, %c0_58] : memref<12x8x96xbf16, #tpu.memory_space<vmem>>, vector<8x8x96xbf16>
    %55 = vector.shape_cast %54 : vector<8x8x96xbf16> to vector<64x96xbf16>
    %c3_59 = arith.constant 3 : index
    %c0_60 = arith.constant 0 : index
    %c0_61 = arith.constant 0 : index
    %56 = vector.load %arg4[%c3_59, %c0_60, %c0_61] : memref<5x96x128xbf16, #tpu.memory_space<vmem>>, vector<1x96x128xbf16>
    %57 = vector.shape_cast %56 : vector<1x96x128xbf16> to vector<96x128xbf16>
    %cst_62 = arith.constant dense<0.000000e+00> : vector<64x128xf32>
    %58 = tpu.matmul %55, %57, %cst_62 {dimension_numbers = #tpu.dot_dimension_numbers<[1], [0], [0], [1], [0, 0, 1, 1], [], []>} : vector<64x96xbf16>, vector<96x128xbf16>, vector<64x128xf32> -> vector<64x128xf32>
    %59 = arith.addf %53, %58 : vector<64x128xf32>
    %c4_63 = arith.constant 4 : index
    %c0_64 = arith.constant 0 : index
    %c0_65 = arith.constant 0 : index
    %60 = vector.load %arg9[%c4_63, %c0_64, %c0_65] : memref<12x8x96xbf16, #tpu.memory_space<vmem>>, vector<8x8x96xbf16>
    %61 = vector.shape_cast %60 : vector<8x8x96xbf16> to vector<64x96xbf16>
    %c4_66 = arith.constant 4 : index
    %c0_67 = arith.constant 0 : index
    %c0_68 = arith.constant 0 : index
    %62 = vector.load %arg4[%c4_66, %c0_67, %c0_68] : memref<5x96x128xbf16, #tpu.memory_space<vmem>>, vector<1x96x128xbf16>
    %63 = vector.shape_cast %62 : vector<1x96x128xbf16> to vector<96x128xbf16>
    %cst_69 = arith.constant dense<0.000000e+00> : vector<64x128xf32>
    %64 = tpu.matmul %61, %63, %cst_69 {dimension_numbers = #tpu.dot_dimension_numbers<[1], [0], [0], [1], [0, 0, 1, 1], [], []>} : vector<64x96xbf16>, vector<96x128xbf16>, vector<64x128xf32> -> vector<64x128xf32>
    %65 = arith.addf %59, %64 : vector<64x128xf32>
    %c0_70 = arith.constant 0 : index
    %c0_71 = arith.constant 0 : index
    %66 = vector.load %arg5[%c0_70, %c0_71] : memref<1x128xf32, #tpu.memory_space<vmem>>, vector<1x128xf32>
    %67 = vector.broadcast %66 : vector<1x128xf32> to vector<64x128xf32>
    %68 = arith.addf %65, %67 : vector<64x128xf32>
    %cst_72 = arith.constant 0.000000e+00 : f32
    %69 = vector.broadcast %cst_72 : f32 to vector<64x128xf32>
    %70 = arith.maximumf %68, %69 : vector<64x128xf32>
    %71 = vector.shape_cast %70 : vector<64x128xf32> to vector<8x8x128xf32>
    %72 = arith.truncf %71 : vector<8x8x128xf32> to vector<8x8x128xbf16>
    %c0_73 = arith.constant 0 : index
    %c0_74 = arith.constant 0 : index
    %c0_75 = arith.constant 0 : index
    %73 = vector.load %arg10[%c0_73, %c0_74, %c0_75] : memref<8x8x128xbf16, #tpu.memory_space<vmem>>, vector<8x8x128xbf16>
    tpu.vector_store %arg10[%c0_73, %c0_74, %c0_75], %72 {strides = array<i32>} : memref<8x8x128xbf16, #tpu.memory_space<vmem>>, vector<8x8x128xbf16>,
    %c0_76 = arith.constant 0 : index
    %c0_77 = arith.constant 0 : index
    %c0_78 = arith.constant 0 : index
    %74 = vector.load %arg10[%c0_76, %c0_77, %c0_78] : memref<8x8x128xbf16, #tpu.memory_space<vmem>>, vector<1x8x128xbf16>
    %75 = vector.shape_cast %74 : vector<1x8x128xbf16> to vector<8x128xbf16>
    %c0_79 = arith.constant 0 : index
    %c0_80 = arith.constant 0 : index
    %c0_81 = arith.constant 0 : index
    %76 = vector.load %arg6[%c0_79, %c0_80, %c0_81] : memref<8x128x128xbf16, #tpu.memory_space<vmem>>, vector<1x128x128xbf16>
    %77 = vector.shape_cast %76 : vector<1x128x128xbf16> to vector<128x128xbf16>
    %cst_82 = arith.constant dense<0.000000e+00> : vector<8x128xf32>
    %78 = tpu.matmul %75, %77, %cst_82 {dimension_numbers = #tpu.dot_dimension_numbers<[1], [0], [0], [1], [0, 0, 1, 1], [], []>} : vector<8x128xbf16>, vector<128x128xbf16>, vector<8x128xf32> -> vector<8x128xf32>
    %c1_83 = arith.constant 1 : index
    %c0_84 = arith.constant 0 : index
    %c0_85 = arith.constant 0 : index
    %79 = vector.load %arg10[%c1_83, %c0_84, %c0_85] : memref<8x8x128xbf16, #tpu.memory_space<vmem>>, vector<1x8x128xbf16>
    %80 = vector.shape_cast %79 : vector<1x8x128xbf16> to vector<8x128xbf16>
    %c1_86 = arith.constant 1 : index
    %c0_87 = arith.constant 0 : index
    %c0_88 = arith.constant 0 : index
    %81 = vector.load %arg6[%c1_86, %c0_87, %c0_88] : memref<8x128x128xbf16, #tpu.memory_space<vmem>>, vector<1x128x128xbf16>
    %82 = vector.shape_cast %81 : vector<1x128x128xbf16> to vector<128x128xbf16>
    %cst_89 = arith.constant dense<0.000000e+00> : vector<8x128xf32>
    %83 = tpu.matmul %80, %82, %cst_89 {dimension_numbers = #tpu.dot_dimension_numbers<[1], [0], [0], [1], [0, 0, 1, 1], [], []>} : vector<8x128xbf16>, vector<128x128xbf16>, vector<8x128xf32> -> vector<8x128xf32>
    %84 = arith.addf %78, %83 : vector<8x128xf32>
    %c2_90 = arith.constant 2 : index
    %c0_91 = arith.constant 0 : index
    %c0_92 = arith.constant 0 : index
    %85 = vector.load %arg10[%c2_90, %c0_91, %c0_92] : memref<8x8x128xbf16, #tpu.memory_space<vmem>>, vector<1x8x128xbf16>
    %86 = vector.shape_cast %85 : vector<1x8x128xbf16> to vector<8x128xbf16>
    %c2_93 = arith.constant 2 : index
    %c0_94 = arith.constant 0 : index
    %c0_95 = arith.constant 0 : index
    %87 = vector.load %arg6[%c2_93, %c0_94, %c0_95] : memref<8x128x128xbf16, #tpu.memory_space<vmem>>, vector<1x128x128xbf16>
    %88 = vector.shape_cast %87 : vector<1x128x128xbf16> to vector<128x128xbf16>
    %cst_96 = arith.constant dense<0.000000e+00> : vector<8x128xf32>
    %89 = tpu.matmul %86, %88, %cst_96 {dimension_numbers = #tpu.dot_dimension_numbers<[1], [0], [0], [1], [0, 0, 1, 1], [], []>} : vector<8x128xbf16>, vector<128x128xbf16>, vector<8x128xf32> -> vector<8x128xf32>
    %90 = arith.addf %84, %89 : vector<8x128xf32>
    %c3_97 = arith.constant 3 : index
    %c0_98 = arith.constant 0 : index
    %c0_99 = arith.constant 0 : index
    %91 = vector.load %arg10[%c3_97, %c0_98, %c0_99] : memref<8x8x128xbf16, #tpu.memory_space<vmem>>, vector<1x8x128xbf16>
    %92 = vector.shape_cast %91 : vector<1x8x128xbf16> to vector<8x128xbf16>
    %c3_100 = arith.constant 3 : index
    %c0_101 = arith.constant 0 : index
    %c0_102 = arith.constant 0 : index
    %93 = vector.load %arg6[%c3_100, %c0_101, %c0_102] : memref<8x128x128xbf16, #tpu.memory_space<vmem>>, vector<1x128x128xbf16>
    %94 = vector.shape_cast %93 : vector<1x128x128xbf16> to vector<128x128xbf16>
    %cst_103 = arith.constant dense<0.000000e+00> : vector<8x128xf32>
    %95 = tpu.matmul %92, %94, %cst_103 {dimension_numbers = #tpu.dot_dimension_numbers<[1], [0], [0], [1], [0, 0, 1, 1], [], []>} : vector<8x128xbf16>, vector<128x128xbf16>, vector<8x128xf32> -> vector<8x128xf32>
    %96 = arith.addf %90, %95 : vector<8x128xf32>
    %c4_104 = arith.constant 4 : index
    %c0_105 = arith.constant 0 : index
    %c0_106 = arith.constant 0 : index
    %97 = vector.load %arg10[%c4_104, %c0_105, %c0_106] : memref<8x8x128xbf16, #tpu.memory_space<vmem>>, vector<1x8x128xbf16>
    %98 = vector.shape_cast %97 : vector<1x8x128xbf16> to vector<8x128xbf16>
    %c4_107 = arith.constant 4 : index
    %c0_108 = arith.constant 0 : index
    %c0_109 = arith.constant 0 : index
    %99 = vector.load %arg6[%c4_107, %c0_108, %c0_109] : memref<8x128x128xbf16, #tpu.memory_space<vmem>>, vector<1x128x128xbf16>
    %100 = vector.shape_cast %99 : vector<1x128x128xbf16> to vector<128x128xbf16>
    %cst_110 = arith.constant dense<0.000000e+00> : vector<8x128xf32>
    %101 = tpu.matmul %98, %100, %cst_110 {dimension_numbers = #tpu.dot_dimension_numbers<[1], [0], [0], [1], [0, 0, 1, 1], [], []>} : vector<8x128xbf16>, vector<128x128xbf16>, vector<8x128xf32> -> vector<8x128xf32>
    %102 = arith.addf %96, %101 : vector<8x128xf32>
    %c5 = arith.constant 5 : index
    %c0_111 = arith.constant 0 : index
    %c0_112 = arith.constant 0 : index
    %103 = vector.load %arg10[%c5, %c0_111, %c0_112] : memref<8x8x128xbf16, #tpu.memory_space<vmem>>, vector<1x8x128xbf16>
    %104 = vector.shape_cast %103 : vector<1x8x128xbf16> to vector<8x128xbf16>
    %c5_113 = arith.constant 5 : index
    %c0_114 = arith.constant 0 : index
    %c0_115 = arith.constant 0 : index
    %105 = vector.load %arg6[%c5_113, %c0_114, %c0_115] : memref<8x128x128xbf16, #tpu.memory_space<vmem>>, vector<1x128x128xbf16>
    %106 = vector.shape_cast %105 : vector<1x128x128xbf16> to vector<128x128xbf16>
    %cst_116 = arith.constant dense<0.000000e+00> : vector<8x128xf32>
    %107 = tpu.matmul %104, %106, %cst_116 {dimension_numbers = #tpu.dot_dimension_numbers<[1], [0], [0], [1], [0, 0, 1, 1], [], []>} : vector<8x128xbf16>, vector<128x128xbf16>, vector<8x128xf32> -> vector<8x128xf32>
    %108 = arith.addf %102, %107 : vector<8x128xf32>
    %c6 = arith.constant 6 : index
    %c0_117 = arith.constant 0 : index
    %c0_118 = arith.constant 0 : index
    %109 = vector.load %arg10[%c6, %c0_117, %c0_118] : memref<8x8x128xbf16, #tpu.memory_space<vmem>>, vector<1x8x128xbf16>
    %110 = vector.shape_cast %109 : vector<1x8x128xbf16> to vector<8x128xbf16>
    %c6_119 = arith.constant 6 : index
    %c0_120 = arith.constant 0 : index
    %c0_121 = arith.constant 0 : index
    %111 = vector.load %arg6[%c6_119, %c0_120, %c0_121] : memref<8x128x128xbf16, #tpu.memory_space<vmem>>, vector<1x128x128xbf16>
    %112 = vector.shape_cast %111 : vector<1x128x128xbf16> to vector<128x128xbf16>
    %cst_122 = arith.constant dense<0.000000e+00> : vector<8x128xf32>
    %113 = tpu.matmul %110, %112, %cst_122 {dimension_numbers = #tpu.dot_dimension_numbers<[1], [0], [0], [1], [0, 0, 1, 1], [], []>} : vector<8x128xbf16>, vector<128x128xbf16>, vector<8x128xf32> -> vector<8x128xf32>
    %114 = arith.addf %108, %113 : vector<8x128xf32>
    %c7 = arith.constant 7 : index
    %c0_123 = arith.constant 0 : index
    %c0_124 = arith.constant 0 : index
    %115 = vector.load %arg10[%c7, %c0_123, %c0_124] : memref<8x8x128xbf16, #tpu.memory_space<vmem>>, vector<1x8x128xbf16>
    %116 = vector.shape_cast %115 : vector<1x8x128xbf16> to vector<8x128xbf16>
    %c7_125 = arith.constant 7 : index
    %c0_126 = arith.constant 0 : index
    %c0_127 = arith.constant 0 : index
    %117 = vector.load %arg6[%c7_125, %c0_126, %c0_127] : memref<8x128x128xbf16, #tpu.memory_space<vmem>>, vector<1x128x128xbf16>
    %118 = vector.shape_cast %117 : vector<1x128x128xbf16> to vector<128x128xbf16>
    %cst_128 = arith.constant dense<0.000000e+00> : vector<8x128xf32>
    %119 = tpu.matmul %116, %118, %cst_128 {dimension_numbers = #tpu.dot_dimension_numbers<[1], [0], [0], [1], [0, 0, 1, 1], [], []>} : vector<8x128xbf16>, vector<128x128xbf16>, vector<8x128xf32> -> vector<8x128xf32>
    %120 = arith.addf %114, %119 : vector<8x128xf32>
    %c0_129 = arith.constant 0 : index
    %c0_130 = arith.constant 0 : index
    %121 = vector.load %arg7[%c0_129, %c0_130] : memref<1x128xf32, #tpu.memory_space<vmem>>, vector<1x128xf32>
    %122 = vector.broadcast %121 : vector<1x128xf32> to vector<8x128xf32>
    %123 = arith.addf %120, %122 : vector<8x128xf32>
    %c0_131 = arith.constant 0 : index
    %c0_132 = arith.constant 0 : index
    %124 = vector.load %arg8[%c0_131, %c0_132] : memref<8x128xf32, #tpu.memory_space<vmem>>, vector<8x128xf32>
    tpu.vector_store %arg8[%c0_131, %c0_132], %123 {strides = array<i32>} : memref<8x128xf32, #tpu.memory_space<vmem>>, vector<8x128xf32>,
    return
  }
  func.func @transform_0(%arg0: i32) -> (i32, i32, i32) {
    %c0_i32 = arith.constant 0 : i32
    %c0_i32_0 = arith.constant 0 : i32
    %c0_i32_1 = arith.constant 0 : i32
    return %c0_i32, %arg0, %c0_i32_0 : i32, i32, i32
  }
  func.func @transform_1(%arg0: i32) -> (i32, i32, i32) {
    %c0_i32 = arith.constant 0 : i32
    %c0_i32_0 = arith.constant 0 : i32
    %c0_i32_1 = arith.constant 0 : i32
    %c0_i32_2 = arith.constant 0 : i32
    return %c0_i32, %c0_i32_0, %c0_i32_1 : i32, i32, i32
  }
  func.func @transform_2(%arg0: i32) -> (i32, i32) {
    %c0_i32 = arith.constant 0 : i32
    %c0_i32_0 = arith.constant 0 : i32
    %c0_i32_1 = arith.constant 0 : i32
    return %c0_i32, %c0_i32_0 : i32, i32
  }
  func.func @transform_3(%arg0: i32) -> (i32, i32, i32) {
    %c0_i32 = arith.constant 0 : i32
    %c0_i32_0 = arith.constant 0 : i32
    %c0_i32_1 = arith.constant 0 : i32
    %c0_i32_2 = arith.constant 0 : i32
    return %c0_i32, %c0_i32_0, %c0_i32_1 : i32, i32, i32
  }
  func.func @transform_4(%arg0: i32) -> (i32, i32) {
    %c0_i32 = arith.constant 0 : i32
    %c0_i32_0 = arith.constant 0 : i32
    %c0_i32_1 = arith.constant 0 : i32
    return %c0_i32, %c0_i32_0 : i32, i32
  }
  func.func @transform_5(%arg0: i32) -> (i32, i32, i32) {
    %c0_i32 = arith.constant 0 : i32
    %c0_i32_0 = arith.constant 0 : i32
    %c0_i32_1 = arith.constant 0 : i32
    %c0_i32_2 = arith.constant 0 : i32
    return %c0_i32, %c0_i32_0, %c0_i32_1 : i32, i32, i32
  }
  func.func @transform_6(%arg0: i32) -> (i32, i32) {
    %c0_i32 = arith.constant 0 : i32
    %c0_i32_0 = arith.constant 0 : i32
    %c0_i32_1 = arith.constant 0 : i32
    return %c0_i32, %c0_i32_0 : i32, i32
  }
  func.func @transform_7(%arg0: i32) -> (i32, i32) {
    %c0_i32 = arith.constant 0 : i32
    %c0_i32_0 = arith.constant 0 : i32
    return %arg0, %c0_i32 : i32, i32
  }
}

</mosaic_0001>

<llo_original>
// kernel: encoder_forward.1
$region0: #{encoder_forward.1}
  #allocation0 [shape = 'u32[]', space=smem, size = 0x4, offset = 0x4, fixed_abs, tag = 'smem constant byte address 0x4 - core index']
  #allocation1 [shape = 'u32[72,128]{1,0:T(1,128)}', space=vmem, size = 0x9000, scoped, tag = 'internal scratch']
  #allocation2 [shape = 'bf16[12,8,96]{2,1,0:T(8,128)(2,1)}', space=vmem, size = 0x6000, scoped, tag = 'scratch operand']
  #allocation3 [shape = 'bf16[8,8,128]{2,1,0:T(8,128)(2,1)}', space=vmem, size = 0x4000, scoped, tag = 'scratch operand']
  %s0 = inlined_call_operand.vmem [shape: bf16[16,16,64], index: 0, kind: input, shape index: {}]
  %s1 = inlined_call_operand.vmem [shape: bf16[5,64,96], index: 1, kind: input, shape index: {}]
  %s2 = inlined_call_operand.vmem [shape: f32[1,96], index: 2, kind: input, shape index: {}]
  %s3 = inlined_call_operand.vmem [shape: bf16[5,96,128], index: 3, kind: input, shape index: {}]
  %s4 = inlined_call_operand.vmem [shape: f32[1,128], index: 4, kind: input, shape index: {}]
  %s5 = inlined_call_operand.vmem [shape: bf16[8,128,128], index: 5, kind: input, shape index: {}]
  %s6 = inlined_call_operand.vmem [shape: f32[1,128], index: 6, kind: input, shape index: {}]
  %s7 = inlined_call_operand.hbm [shape: f32[16,128], index: 7, kind: output, shape index: {}]
  %s8 = sld [smem:[#allocation0]]
  $region102: #{encoder_forward.1} parent=0
    _
  %s10 = ssub.s32 1, %s8
  %s11 = scalar_select 0, %s10, %s8
  $region1: #{encoder_forward.1} parent=0
    #allocation4 [shape = 'u8[65536]{0}', space=vmem, size = 0x10000, scoped, tag = 'input window, operand 0']
    #allocation5 [shape = 'u8[8192]{0}', space=vmem, size = 0x2000, scoped, tag = 'output window, operand 0']
    #allocation6 [shape = 's32[2]{0}', space=sflag, size = 0x8, scoped, tag = 'scoped memory for encoder_forward.1']
    %12 = vsyncpa [#allocation6], 0
    %s13 = scalar_lea.sflag [#allocation6], 1
    %14 = vsyncpa %s13, 0
    loop: start=0, step=1, limit=4
    $region2: #{encoder_forward.1} parent=1 // loop_pre_header
      _
    $region3: #{encoder_forward.1} parent=1 // loop_header
      %s16 = sphi 0, %s20
      %p17 = scmp.ge.s32.totalorder %s16, 4
      %s26 = sphi 0, %s28
      %s29 = sphi 0, %s26
      %s30 = sphi 0, %s29
      %s46 = sphi 0, %s30
      %s50 = sphi 0, %s50
      %s52 = sphi 0, %s50
      %s53 = sphi 0, %s52
      %s67 = sphi 0, %s53
      %s71 = sphi 0, %s71
      %s73 = sphi 0, %s71
      %s74 = sphi 0, %s73
      %s88 = sphi 0, %s74
      %s92 = sphi 0, %s92
      %s94 = sphi 0, %s92
      %s95 = sphi 0, %s94
      %s109 = sphi 0, %s95
      %s113 = sphi 0, %s113
      %s115 = sphi 0, %s113
      %s116 = sphi 0, %s115
      %s130 = sphi 0, %s116
      %s134 = sphi 0, %s134
      %s136 = sphi 0, %s134
      %s137 = sphi 0, %s136
      %s151 = sphi 0, %s137
      %s155 = sphi 0, %s155
      %s157 = sphi 0, %s155
      %s158 = sphi 0, %s157
      %s172 = sphi 0, %s158
      %s178 = sphi 0, %s180
      %s181 = sphi 0, %s178
      %s182 = sphi 0, %s181
      %s198 = sphi 0, %s182
    $region4: #{encoder_forward.1} parent=1 // loop_header_branch
      %19 = sbr.rel (%p17) target = $region8
    $region5: #{encoder_forward.1} parent=1 // loop_body
      %s21 = ssub.s32 %s16, 1
      %s22 = ssub.s32 %s16, 2
      %s23 = sadd.s32 %s16, 1
      %s24 = ssub.s32 %s16, %s23
      %p25 = scmp.eq.s32.totalorder %s24, 0
      %s27 = sadd.s32 %s26, 1
      %s28 = scalar_select %p25, %s26, %s27
      %p31 = pneg %p25
      %p32 = scmp.eq.s32.totalorder %s16, 1
      %p33 = por %p31, %p32
      %p34 = scmp.ne.s32.totalorder %s26, %s29
      %p35 = scmp.eq.s32.totalorder %s16, 0
      %p36 = por %p34, %p35
      %p37 = scmp.ne.s32.totalorder %s26, %s29
      %p38 = scmp.eq.s32.totalorder %s21, 1
      %p39 = por %p37, %p38
      %p40 = scmp.ne.s32.totalorder %s29, %s30
      %p41 = scmp.eq.s32.totalorder %s21, 0
      %p42 = por %p40, %p41
      %p43 = scmp.ne.s32.totalorder %s29, %s30
      %p44 = scmp.eq.s32.totalorder %s22, 1
      %p45 = por %p43, %p44
      %p47 = scmp.ne.s32.totalorder %s30, %s46
      %p48 = scmp.eq.s32.totalorder %s22, 0
      %p49 = por %p47, %p48
      %s51 = sadd.s32 %s50, 1
      %p54 = scmp.eq.s32.totalorder %s16, 1
      %p55 = scmp.ne.s32.totalorder %s50, %s52
      %p56 = scmp.eq.s32.totalorder %s16, 0
      %p57 = por %p55, %p56
      %p58 = scmp.ne.s32.totalorder %s50, %s52
      %p59 = scmp.eq.s32.totalorder %s21, 1
      %p60 = por %p58, %p59
      %p61 = scmp.ne.s32.totalorder %s52, %s53
      %p62 = scmp.eq.s32.totalorder %s21, 0
      %p63 = por %p61, %p62
      %p64 = scmp.ne.s32.totalorder %s52, %s53
      %p65 = scmp.eq.s32.totalorder %s22, 1
      %p66 = por %p64, %p65
      %p68 = scmp.ne.s32.totalorder %s53, %s67
      %p69 = scmp.eq.s32.totalorder %s22, 0
      %p70 = por %p68, %p69
      %s72 = sadd.s32 %s71, 1
      %p75 = scmp.eq.s32.totalorder %s16, 1
      %p76 = scmp.ne.s32.totalorder %s71, %s73
      %p77 = scmp.eq.s32.totalorder %s16, 0
      %p78 = por %p76, %p77
      %p79 = scmp.ne.s32.totalorder %s71, %s73
      %p80 = scmp.eq.s32.totalorder %s21, 1
      %p81 = por %p79, %p80
      %p82 = scmp.ne.s32.totalorder %s73, %s74
      %p83 = scmp.eq.s32.totalorder %s21, 0
      %p84 = por %p82, %p83
      %p85 = scmp.ne.s32.totalorder %s73, %s74
      %p86 = scmp.eq.s32.totalorder %s22, 1
      %p87 = por %p85, %p86
      %p89 = scmp.ne.s32.totalorder %s74, %s88
      %p90 = scmp.eq.s32.totalorder %s22, 0
      %p91 = por %p89, %p90
      %s93 = sadd.s32 %s92, 1
      %p96 = scmp.eq.s32.totalorder %s16, 1
      %p97 = scmp.ne.s32.totalorder %s92, %s94
      %p98 = scmp.eq.s32.totalorder %s16, 0
      %p99 = por %p97, %p98
      %p100 = scmp.ne.s32.totalorder %s92, %s94
      %p101 = scmp.eq.s32.totalorder %s21, 1
      %p102 = por %p100, %p101
      %p103 = scmp.ne.s32.totalorder %s94, %s95
      %p104 = scmp.eq.s32.totalorder %s21, 0
      %p105 = por %p103, %p104
      %p106 = scmp.ne.s32.totalorder %s94, %s95
      %p107 = scmp.eq.s32.totalorder %s22, 1
      %p108 = por %p106, %p107
      %p110 = scmp.ne.s32.totalorder %s95, %s109
      %p111 = scmp.eq.s32.totalorder %s22, 0
      %p112 = por %p110, %p111
      %s114 = sadd.s32 %s113, 1
      %p117 = scmp.eq.s32.totalorder %s16, 1
      %p118 = scmp.ne.s32.totalorder %s113, %s115
      %p119 = scmp.eq.s32.totalorder %s16, 0
      %p120 = por %p118, %p119
      %p121 = scmp.ne.s32.totalorder %s113, %s115
      %p122 = scmp.eq.s32.totalorder %s21, 1
      %p123 = por %p121, %p122
      %p124 = scmp.ne.s32.totalorder %s115, %s116
      %p125 = scmp.eq.s32.totalorder %s21, 0
      %p126 = por %p124, %p125
      %p127 = scmp.ne.s32.totalorder %s115, %s116
      %p128 = scmp.eq.s32.totalorder %s22, 1
      %p129 = por %p127, %p128
      %p131 = scmp.ne.s32.totalorder %s116, %s130
      %p132 = scmp.eq.s32.totalorder %s22, 0
      %p133 = por %p131, %p132
      %s135 = sadd.s32 %s134, 1
      %p138 = scmp.eq.s32.totalorder %s16, 1
      %p139 = scmp.ne.s32.totalorder %s134, %s136
      %p140 = scmp.eq.s32.totalorder %s16, 0
      %p141 = por %p139, %p140
      %p142 = scmp.ne.s32.totalorder %s134, %s136
      %p143 = scmp.eq.s32.totalorder %s21, 1
      %p144 = por %p142, %p143
      %p145 = scmp.ne.s32.totalorder %s136, %s137
      %p146 = scmp.eq.s32.totalorder %s21, 0
      %p147 = por %p145, %p146
      %p148 = scmp.ne.s32.totalorder %s136, %s137
      %p149 = scmp.eq.s32.totalorder %s22, 1
      %p150 = por %p148, %p149
      %p152 = scmp.ne.s32.totalorder %s137, %s151
      %p153 = scmp.eq.s32.totalorder %s22, 0
      %p154 = por %p152, %p153
      %s156 = sadd.s32 %s155, 1
      %p159 = scmp.eq.s32.totalorder %s16, 1
      %p160 = scmp.ne.s32.totalorder %s155, %s157
      %p161 = scmp.eq.s32.totalorder %s16, 0
      %p162 = por %p160, %p161
      %p163 = scmp.ne.s32.totalorder %s155, %s157
      %p164 = scmp.eq.s32.totalorder %s21, 1
      %p165 = por %p163, %p164
      %p166 = scmp.ne.s32.totalorder %s157, %s158
      %p167 = scmp.eq.s32.totalorder %s21, 0
      %p168 = por %p166, %p167
      %p169 = scmp.ne.s32.totalorder %s157, %s158
      %p170 = scmp.eq.s32.totalorder %s22, 1
      %p171 = por %p169, %p170
      %p173 = scmp.ne.s32.totalorder %s158, %s172
      %p174 = scmp.eq.s32.totalorder %s22, 0
      %p175 = por %p173, %p174
      %s176 = ssub.s32 %s16, %s23
      %p177 = scmp.eq.s32.totalorder %s176, 0
      %s179 = sadd.s32 %s178, 1
      %s180 = scalar_select %p177, %s178, %s179
      %p183 = pneg %p177
      %p184 = scmp.eq.s32.totalorder %s16, 1
      %p185 = por %p183, %p184
      %p186 = scmp.ne.s32.totalorder %s178, %s181
      %p187 = scmp.eq.s32.totalorder %s16, 0
      %p188 = por %p186, %p187
      %p189 = scmp.ne.s32.totalorder %s178, %s181
      %p190 = scmp.eq.s32.totalorder %s21, 1
      %p191 = por %p189, %p190
      %p192 = scmp.ne.s32.totalorder %s181, %s182
      %p193 = scmp.eq.s32.totalorder %s21, 0
      %p194 = por %p192, %p193
      %p195 = scmp.ne.s32.totalorder %s181, %s182
      %p196 = scmp.eq.s32.totalorder %s22, 1
      %p197 = por %p195, %p196
      %p199 = scmp.ne.s32.totalorder %s182, %s198
      %p200 = scmp.eq.s32.totalorder %s22, 0
      %p201 = por %p199, %p200
      %p202 = scmp.le.s32.totalorder 1, %s16
      %p203 = scmp.lt.s32.totalorder %s16, 3
      %p204 = pnand %p202, %p203
      %p205 = pneg %p204
      // Predicated region
      $region9: #{encoder_forward.1} parent=5 // pred_check
        _
      $region10: #{encoder_forward.1} parent=5 // pred_check_branch
        %207 = sbr.rel (%p204) target = $region12
      $region11: #{encoder_forward.1} parent=5 // pred_region
        %s208 = ssub.s32 %s16, 1
        // Predicated region
        $region13: #{encoder_forward.1} parent=11 // pred_check
          %p209 = pneg %p63
        $region14: #{encoder_forward.1} parent=11 // pred_check_branch
          %211 = sbr.rel (%p209) target = $region16
        $region15: #{encoder_forward.1} parent=11 // pred_region
          _
        $region16: #{encoder_forward.1} parent=11 // pred_fallthru
          _
        // Predicated region
        $region17: #{encoder_forward.1} parent=11 // pred_check
          %p212 = pneg %p84
        $region18: #{encoder_forward.1} parent=11 // pred_check_branch
          %214 = sbr.rel (%p212) target = $region20
        $region19: #{encoder_forward.1} parent=11 // pred_region
          _
        $region20: #{encoder_forward.1} parent=11 // pred_fallthru
          _
        // Predicated region
        $region21: #{encoder_forward.1} parent=11 // pred_check
          %p215 = pneg %p105
        $region22: #{encoder_forward.1} parent=11 // pred_check_branch
          %217 = sbr.rel (%p215) target = $region24
        $region23: #{encoder_forward.1} parent=11 // pred_region
          _
        $region24: #{encoder_forward.1} parent=11 // pred_fallthru
          _
        // Predicated region
        $region25: #{encoder_forward.1} parent=11 // pred_check
          %p218 = pneg %p126
        $region26: #{encoder_forward.1} parent=11 // pred_check_branch
          %220 = sbr.rel (%p218) target = $region28
        $region27: #{encoder_forward.1} parent=11 // pred_region
          _
        $region28: #{encoder_forward.1} parent=11 // pred_fallthru
          _
        // Predicated region
        $region29: #{encoder_forward.1} parent=11 // pred_check
          %p221 = pneg %p147
        $region30: #{encoder_forward.1} parent=11 // pred_check_branch
          %223 = sbr.rel (%p221) target = $region32
        $region31: #{encoder_forward.1} parent=11 // pred_region
          _
        $region32: #{encoder_forward.1} parent=11 // pred_fallthru
          _
        // Predicated region
        $region33: #{encoder_forward.1} parent=11 // pred_check
          %p224 = pneg %p168
        $region34: #{encoder_forward.1} parent=11 // pred_check_branch
          %226 = sbr.rel (%p224) target = $region36
        $region35: #{encoder_forward.1} parent=11 // pred_region
          _
        $region36: #{encoder_forward.1} parent=11 // pred_fallthru
          _
      $region12: #{encoder_forward.1} parent=5 // pred_fallthru
        _
      %p227 = scmp.lt.s32.totalorder %s16, 2
      // Predicated region
      $region37: #{encoder_forward.1} parent=5 // pred_check
        %p228 = pneg %p227
      $region38: #{encoder_forward.1} parent=5 // pred_check_branch
        %230 = sbr.rel (%p228) target = $region40
      $region39: #{encoder_forward.1} parent=5 // pred_region
        // Predicated region
        $region41: #{encoder_forward.1} parent=39 // pred_check
          %p231 = pneg %p36
        $region42: #{encoder_forward.1} parent=39 // pred_check_branch
          %233 = sbr.rel (%p231) target = $region44
        $region43: #{encoder_forward.1} parent=39 // pred_region
          %s234 = sand.u32 %s26, 1
          %s235 = sand.u32 %s26, 1
          %s236 = smul.addr %s235, 64
          %s237 = scalar_lea.vmem [#allocation4], %s236
          %s238 = smul.addr %s16, 4
          %s239 = scalar_lea.vmem %s0, %s238
          // Predicated region
          $region45: #{encoder_forward.1} parent=43 // pred_check
            _
          $region46: #{encoder_forward.1} parent=43 // pred_check_branch
            %241 = sbr.rel (0) target = $region48
          $region47: #{encoder_forward.1} parent=43 // pred_region
            // Predicated region
            $region49: #{encoder_forward.1} parent=47 // pred_check
              _
            $region50: #{encoder_forward.1} parent=47 // pred_check_branch
              %243 = sbr.rel target = $region52
            $region51: #{encoder_forward.1} parent=47 // pred_region
              // Predicated region
              $region64: #{encoder_forward.1} parent=51 // pred_check
                _
              $region65: #{encoder_forward.1} parent=51 // pred_check_branch
                %289 = sbr.rel (0) target = $region67
              $region66: #{encoder_forward.1} parent=51 // pred_region
                loop: start=0, step=1, limit=1
                $region68: #{encoder_forward.1} parent=66 // loop_pre_header
                  _
                $region69: #{encoder_forward.1} parent=66 // loop_header
                  %s291 = sphi 0, %s295
                  %p292 = scmp.ge.s32.totalorder %s291, 1
                  %s296 = sphi %s239, %s239
                  %s297 = sphi %s237, %s237
                $region70: #{encoder_forward.1} parent=66 // loop_header_branch
                  %294 = sbr.rel (%p292) target = $region74
                $region71: #{encoder_forward.1} parent=66 // loop_body
                  _
                $region72: #{encoder_forward.1} parent=66 // loop_footer
                  %s295 = sadd.s32 1, %s291
                $region73: #{encoder_forward.1} parent=66 // loop_footer_branch
                  %290 = sbr.rel target = $region69
                $region74: #{encoder_forward.1} parent=66 // loop_exit
                  _
                %s299 = ssub.s32 16, 1
                loop: start=0, step=1, limit=1
                $region75: #{encoder_forward.1} parent=66 // loop_pre_header
                  _
                $region76: #{encoder_forward.1} parent=66 // loop_header
                  %s301 = sphi 0, %s305
                  %p302 = scmp.ge.s32.totalorder %s301, 1
                  %s306 = sphi %s239, %s239
                  %s307 = sphi %s237, %s237
                $region77: #{encoder_forward.1} parent=66 // loop_header_branch
                  %304 = sbr.rel (%p302) target = $region81
                $region78: #{encoder_forward.1} parent=66 // loop_body
                  %v308 = vld [vmem:[%s306] sm:%s299]
                  %309 = vst [vmem:[%s307] sm:%s299] %v308
                  %v310 = vld [vmem:[%s306 + $0x8] sm:%s299]
                  %311 = vst [vmem:[%s307 + $0x4] sm:%s299] %v310
                  %v312 = vld [vmem:[%s306 + $0x10] sm:%s299]
                  %313 = vst [vmem:[%s307 + $0x8] sm:%s299] %v312
                  %v314 = vld [vmem:[%s306 + $0x18] sm:%s299]
                  %315 = vst [vmem:[%s307 + $0xc] sm:%s299] %v314
                  %v316 = vld [vmem:[%s306 + $0x20] sm:%s299]
                  %317 = vst [vmem:[%s307 + $0x10] sm:%s299] %v316
                  %v318 = vld [vmem:[%s306 + $0x28] sm:%s299]
                  %319 = vst [vmem:[%s307 + $0x14] sm:%s299] %v318
                  %v320 = vld [vmem:[%s306 + $0x30] sm:%s299]
                  %321 = vst [vmem:[%s307 + $0x18] sm:%s299] %v320
                  %v322 = vld [vmem:[%s306 + $0x38] sm:%s299]
                  %323 = vst [vmem:[%s307 + $0x1c] sm:%s299] %v322
                  %v324 = vld [vmem:[%s306 + $0x40] sm:%s299]
                  %325 = vst [vmem:[%s307 + $0x20] sm:%s299] %v324
                  %v326 = vld [vmem:[%s306 + $0x48] sm:%s299]
                  %327 = vst [vmem:[%s307 + $0x24] sm:%s299] %v326
                  %v328 = vld [vmem:[%s306 + $0x50] sm:%s299]
                  %329 = vst [vmem:[%s307 + $0x28] sm:%s299] %v328
                  %v330 = vld [vmem:[%s306 + $0x58] sm:%s299]
                  %331 = vst [vmem:[%s307 + $0x2c] sm:%s299] %v330
                  %v332 = vld [vmem:[%s306 + $0x60] sm:%s299]
                  %333 = vst [vmem:[%s307 + $0x30] sm:%s299] %v332
                  %v334 = vld [vmem:[%s306 + $0x68] sm:%s299]
                  %335 = vst [vmem:[%s307 + $0x34] sm:%s299] %v334
                  %v336 = vld [vmem:[%s306 + $0x70] sm:%s299]
                  %337 = vst [vmem:[%s307 + $0x38] sm:%s299] %v336
                  %v338 = vld [vmem:[%s306 + $0x78] sm:%s299]
                  %339 = vst [vmem:[%s307 + $0x3c] sm:%s299] %v338
                $region79: #{encoder_forward.1} parent=66 // loop_footer
                  %s305 = sadd.s32 1, %s301
                $region80: #{encoder_forward.1} parent=66 // loop_footer_branch
                  %300 = sbr.rel target = $region76
                $region81: #{encoder_forward.1} parent=66 // loop_exit
                  _
              $region67: #{encoder_forward.1} parent=51 // pred_fallthru
                _
            $region52: #{encoder_forward.1} parent=47 // pred_fallthru
              _
            // Predicated region
            $region53: #{encoder_forward.1} parent=47 // pred_check
              _
            $region54: #{encoder_forward.1} parent=47 // pred_check_branch
              %245 = sbr.rel (0) target = $region56
            $region55: #{encoder_forward.1} parent=47 // pred_region
              %s247 = ssub.s32 16, 1
              loop: start=0, step=1, limit=1
              $region57: #{encoder_forward.1} parent=55 // loop_pre_header
                _
              $region58: #{encoder_forward.1} parent=55 // loop_header
                %s249 = sphi 0, %s253
                %p250 = scmp.ge.s32.totalorder %s249, 1
                %s254 = sphi %s239, %s239
                %s255 = sphi %s237, %s237
              $region59: #{encoder_forward.1} parent=55 // loop_header_branch
                %252 = sbr.rel (%p250) target = $region63
              $region60: #{encoder_forward.1} parent=55 // loop_body
                %v256 = vld [vmem:[%s254] sm:%s247]
                %257 = vst [vmem:[%s255] sm:%s247] %v256
                %v258 = vld [vmem:[%s254 + $0x8] sm:%s247]
                %259 = vst [vmem:[%s255 + $0x4] sm:%s247] %v258
                %v260 = vld [vmem:[%s254 + $0x10] sm:%s247]
                %261 = vst [vmem:[%s255 + $0x8] sm:%s247] %v260
                %v262 = vld [vmem:[%s254 + $0x18] sm:%s247]
                %263 = vst [vmem:[%s255 + $0xc] sm:%s247] %v262
                %v264 = vld [vmem:[%s254 + $0x20] sm:%s247]
                %265 = vst [vmem:[%s255 + $0x10] sm:%s247] %v264
                %v266 = vld [vmem:[%s254 + $0x28] sm:%s247]
                %267 = vst [vmem:[%s255 + $0x14] sm:%s247] %v266
                %v268 = vld [vmem:[%s254 + $0x30] sm:%s247]
                %269 = vst [vmem:[%s255 + $0x18] sm:%s247] %v268
                %v270 = vld [vmem:[%s254 + $0x38] sm:%s247]
                %271 = vst [vmem:[%s255 + $0x1c] sm:%s247] %v270
                %v272 = vld [vmem:[%s254 + $0x40] sm:%s247]
                %273 = vst [vmem:[%s255 + $0x20] sm:%s247] %v272
                %v274 = vld [vmem:[%s254 + $0x48] sm:%s247]
                %275 = vst [vmem:[%s255 + $0x24] sm:%s247] %v274
                %v276 = vld [vmem:[%s254 + $0x50] sm:%s247]
                %277 = vst [vmem:[%s255 + $0x28] sm:%s247] %v276
                %v278 = vld [vmem:[%s254 + $0x58] sm:%s247]
                %279 = vst [vmem:[%s255 + $0x2c] sm:%s247] %v278
                %v280 = vld [vmem:[%s254 + $0x60] sm:%s247]
                %281 = vst [vmem:[%s255 + $0x30] sm:%s247] %v280
                %v282 = vld [vmem:[%s254 + $0x68] sm:%s247]
                %283 = vst [vmem:[%s255 + $0x34] sm:%s247] %v282
                %v284 = vld [vmem:[%s254 + $0x70] sm:%s247]
                %285 = vst [vmem:[%s255 + $0x38] sm:%s247] %v284
                %v286 = vld [vmem:[%s254 + $0x78] sm:%s247]
                %287 = vst [vmem:[%s255 + $0x3c] sm:%s247] %v286
              $region61: #{encoder_forward.1} parent=55 // loop_footer
                %s253 = sadd.s32 1, %s249
              $region62: #{encoder_forward.1} parent=55 // loop_footer_branch
                %248 = sbr.rel target = $region58
              $region63: #{encoder_forward.1} parent=55 // loop_exit
                _
            $region56: #{encoder_forward.1} parent=47 // pred_fallthru
              _
          $region48: #{encoder_forward.1} parent=43 // pred_fallthru
            _
          %340 = vnop
        $region44: #{encoder_forward.1} parent=39 // pred_fallthru
          _
      $region40: #{encoder_forward.1} parent=5 // pred_fallthru
        _
      %p341 = scmp.le.s32.totalorder 1, %s16
      %p342 = scmp.lt.s32.totalorder %s16, 3
      %p343 = pnand %p341, %p342
      %p344 = pneg %p343
      // Predicated region
      $region82: #{encoder_forward.1} parent=5 // pred_check
        _
      $region83: #{encoder_forward.1} parent=5 // pred_check_branch
        %346 = sbr.rel (%p343) target = $region85
      $region84: #{encoder_forward.1} parent=5 // pred_region
        %s347 = ssub.s32 %s16, 1
        %s348 = sand.u32 %s29, 1
        %s349 = sand.u32 %s29, 1
        %s350 = smul.addr %s349, 64
        %s351 = scalar_lea.vmem [#allocation4], %s350
        // Predicated region
        $region86: #{encoder_forward.1} parent=84 // pred_check
          %p352 = pneg %p42
        $region87: #{encoder_forward.1} parent=84 // pred_check_branch
          %354 = sbr.rel (%p352) target = $region89
        $region88: #{encoder_forward.1} parent=84 // pred_region
          _
        $region89: #{encoder_forward.1} parent=84 // pred_fallthru
          _
        %s355 = sand.u32 %s29, 1
        %s356 = sand.u32 %s29, 1
        %s357 = smul.addr %s356, 64
        %s358 = scalar_lea.vmem [#allocation4], %s357
        %p359 = pneg %p42
        %p360 = pneg %p39
        %p361 = pneg %p63
        %p362 = pneg %p60
        %p363 = pneg %p84
        %p364 = pneg %p81
        %p365 = pneg %p105
        %p366 = pneg %p102
        %p367 = pneg %p126
        %p368 = pneg %p123
        %p369 = pneg %p147
        %p370 = pneg %p144
        %p371 = pneg %p168
        %p372 = pneg %p165
        %p373 = pneg %p194
        %p374 = pneg %p191
        %s375 = sand.u32 %s181, 1
        %s376 = scalar_lea.sflag [#allocation6], %s375
        %s377 = sand.u32 %s181, 1
        %s378 = smul.addr %s377, 8
        %s379 = scalar_lea.vmem [#allocation5], %s378
        %v381 = vld [vmem:[%s351] sm:$0xf]
        %v382 = vld [vmem:[%s351 + $0x4] sm:$0xf]
        %v383 = vld [vmem:[%s351 + $0x8] sm:$0xf]
        %v384 = vld [vmem:[%s351 + $0xc] sm:$0xf]
        %v385 = vld [vmem:[%s351 + $0x10] sm:$0xf]
        %v386 = vld [vmem:[%s351 + $0x14] sm:$0xf]
        %v387 = vld [vmem:[%s351 + $0x18] sm:$0xf]
        %v388 = vld [vmem:[%s351 + $0x1c] sm:$0xf]
        %v389 = vld [vmem:[%s351 + $0x20] sm:$0xf]
        %v390 = vld [vmem:[%s351 + $0x24] sm:$0xf]
        %v391 = vld [vmem:[%s351 + $0x28] sm:$0xf]
        %v392 = vld [vmem:[%s351 + $0x2c] sm:$0xf]
        %v393 = vld [vmem:[%s1] sm:$0xf]
        %v394 = vld [vmem:[%s1 + $0x4] sm:$0xf]
        %v395 = vld [vmem:[%s1 + $0x8] sm:$0xf]
        %v396 = vld [vmem:[%s1 + $0xc] sm:$0xf]
        %v397 = vld [vmem:[%s1 + $0x10] sm:$0xf]
        %v398 = vld [vmem:[%s1 + $0x14] sm:$0xf]
        %v399 = vld [vmem:[%s1 + $0x18] sm:$0xf]
        %v400 = vld [vmem:[%s1 + $0x1c] sm:$0xf]
        %s401 = scalar_lea.vmem %s351, 4 [#allocation4]
        %v402 = vld [vmem:[%s401] sm:$0xf]
        %v403 = vld [vmem:[%s401 + $0x4] sm:$0xf]
        %v404 = vld [vmem:[%s401 + $0x8] sm:$0xf]
        %v405 = vld [vmem:[%s401 + $0xc] sm:$0xf]
        %v406 = vld [vmem:[%s401 + $0x10] sm:$0xf]
        %v407 = vld [vmem:[%s401 + $0x14] sm:$0xf]
        %v408 = vld [vmem:[%s401 + $0x18] sm:$0xf]
        %v409 = vld [vmem:[%s401 + $0x1c] sm:$0xf]
        %v410 = vld [vmem:[%s401 + $0x20] sm:$0xf]
        %v411 = vld [vmem:[%s401 + $0x24] sm:$0xf]
        %v412 = vld [vmem:[%s401 + $0x28] sm:$0xf]
        %v413 = vld [vmem:[%s401 + $0x2c] sm:$0xf]
        %s414 = scalar_lea.vmem %s1, 32
        %v415 = vld [vmem:[%s414] sm:$0xf]
        %v416 = vld [vmem:[%s414 + $0x4] sm:$0xf]
        %v417 = vld [vmem:[%s414 + $0x8] sm:$0xf]
        %v418 = vld [vmem:[%s414 + $0xc] sm:$0xf]
        %v419 = vld [vmem:[%s414 + $0x10] sm:$0xf]
        %v420 = vld [vmem:[%s414 + $0x14] sm:$0xf]
        %v421 = vld [vmem:[%s414 + $0x18] sm:$0xf]
        %v422 = vld [vmem:[%s414 + $0x1c] sm:$0xf]
        %v435 = vunpack.c.l.b16 %v402
        %v436 = vunpack.c.l.b16 %v403
        %v437 = vunpack.c.l.b16 %v404
        %v438 = vunpack.c.l.b16 %v405
        %v439 = vunpack.c.l.b16 %v406
        %v440 = vunpack.c.l.b16 %v407
        %v441 = vunpack.c.l.b16 %v408
        %v442 = vunpack.c.l.b16 %v409
        %v443 = vunpack.c.l.b16 %v410
        %v444 = vunpack.c.l.b16 %v411
        %v445 = vunpack.c.l.b16 %v412
        %v446 = vunpack.c.l.b16 %v413
        %v447 = vpack.c.b16 %v436, %v435
        %v448 = vpack.c.b16 %v438, %v437
        %v449 = vpack.c.b16 %v440, %v439
        %v450 = vpack.c.b16 %v442, %v441
        %v451 = vpack.c.b16 %v444, %v443
        %v452 = vpack.c.b16 %v446, %v445
        %v461 = vunpack.c.l.b16 %v415
        %v462 = vunpack.c.l.b16 %v416
        %v463 = vunpack.c.l.b16 %v417
        %v464 = vunpack.c.l.b16 %v418
        %v465 = vunpack.c.l.b16 %v419
        %v466 = vunpack.c.l.b16 %v420
        %v467 = vunpack.c.l.b16 %v421
        %v468 = vunpack.c.l.b16 %v422
        %v469 = vpack.c.b16 %v462, %v461
        %v470 = vpack.c.b16 %v464, %v463
        %v471 = vpack.c.b16 %v466, %v465
        %v472 = vpack.c.b16 %v468, %v467
        %vm477 = vcmask 523264
        %v479 = vsel %vm477, %v447, 0
        %v482 = vsel %vm477, %v448, 0
        %v485 = vsel %vm477, %v449, 0
        %v488 = vsel %vm477, %v450, 0
        %v491 = vsel %vm477, %v451, 0
        %v494 = vsel %vm477, %v452, 0
        %496 = vmatpush.bf16.msra.mxu0 0
        %497 = vmatpush.bf16.msra.mxu0 0
        %498 = vmatpush.bf16.msra.mxu0 0
        %499 = vmatpush.bf16.msra.mxu0 0
        %500 = vmatpush.bf16.msra.mxu0 %v472
        %501 = vmatpush.bf16.msra.mxu0 %v471
        %502 = vmatpush.bf16.msra.mxu0 %v470
        %503 = vmatpush.bf16.msra.mxu0 %v469
        %504 = vmatmul.bf16.gmra.mxu0 %v479
        %v505 = vpop.f32.mrf.mxu0
        %v506 = vadd.f32 0.0, %v505
        %v507 = vpop.f32.mrf.mxu0
        %v508 = vadd.f32 0.0, %v507
        %509 = vmatmul.bf16.gmra.mxu0 %v482
        %v510 = vpop.f32.mrf.mxu0
        %v511 = vadd.f32 0.0, %v510
        %v512 = vpop.f32.mrf.mxu0
        %v513 = vadd.f32 0.0, %v512
        %514 = vmatmul.bf16.gmra.mxu0 %v485
        %v515 = vpop.f32.mrf.mxu0
        %v516 = vadd.f32 0.0, %v515
        %v517 = vpop.f32.mrf.mxu0
        %v518 = vadd.f32 0.0, %v517
        %519 = vmatmul.bf16.gmra.mxu0 %v488
        %v520 = vpop.f32.mrf.mxu0
        %v521 = vadd.f32 0.0, %v520
        %v522 = vpop.f32.mrf.mxu0
        %v523 = vadd.f32 0.0, %v522
        %524 = vmatmul.bf16.gmra.mxu0 %v491
        %v525 = vpop.f32.mrf.mxu0
        %v526 = vadd.f32 0.0, %v525
        %v527 = vpop.f32.mrf.mxu0
        %v528 = vadd.f32 0.0, %v527
        %529 = vmatmul.bf16.gmra.mxu0 %v494
        %v530 = vpop.f32.mrf.mxu0
        %v531 = vadd.f32 0.0, %v530
        %v532 = vpop.f32.mrf.mxu0
        %v533 = vadd.f32 0.0, %v532
        %534 = vdwg.mxu0
        %v547 = vunpack.c.l.b16 %v381
        %v548 = vunpack.c.l.b16 %v382
        %v549 = vunpack.c.l.b16 %v383
        %v550 = vunpack.c.l.b16 %v384
        %v551 = vunpack.c.l.b16 %v385
        %v552 = vunpack.c.l.b16 %v386
        %v553 = vunpack.c.l.b16 %v387
        %v554 = vunpack.c.l.b16 %v388
        %v555 = vunpack.c.l.b16 %v389
        %v556 = vunpack.c.l.b16 %v390
        %v557 = vunpack.c.l.b16 %v391
        %v558 = vunpack.c.l.b16 %v392
        %v559 = vpack.c.b16 %v548, %v547
        %v560 = vpack.c.b16 %v550, %v549
        %v561 = vpack.c.b16 %v552, %v551
        %v562 = vpack.c.b16 %v554, %v553
        %v563 = vpack.c.b16 %v556, %v555
        %v564 = vpack.c.b16 %v558, %v557
        %v573 = vunpack.c.l.b16 %v393
        %v574 = vunpack.c.l.b16 %v394
        %v575 = vunpack.c.l.b16 %v395
        %v576 = vunpack.c.l.b16 %v396
        %v577 = vunpack.c.l.b16 %v397
        %v578 = vunpack.c.l.b16 %v398
        %v579 = vunpack.c.l.b16 %v399
        %v580 = vunpack.c.l.b16 %v400
        %v581 = vpack.c.b16 %v574, %v573
        %v582 = vpack.c.b16 %v576, %v575
        %v583 = vpack.c.b16 %v578, %v577
        %v584 = vpack.c.b16 %v580, %v579
        %v590 = vsel %vm477, %v559, 0
        %v593 = vsel %vm477, %v560, 0
        %v596 = vsel %vm477, %v561, 0
        %v599 = vsel %vm477, %v562, 0
        %v602 = vsel %vm477, %v563, 0
        %v605 = vsel %vm477, %v564, 0
        %607 = vmatpush.bf16.msra.mxu0 0
        %608 = vmatpush.bf16.msra.mxu0 0
        %609 = vmatpush.bf16.msra.mxu0 0
        %610 = vmatpush.bf16.msra.mxu0 0
        %611 = vmatpush.bf16.msra.mxu0 %v584
        %612 = vmatpush.bf16.msra.mxu0 %v583
        %613 = vmatpush.bf16.msra.mxu0 %v582
        %614 = vmatpush.bf16.msra.mxu0 %v581
        %615 = vmatmul.bf16.gmra.mxu0 %v590
        %v616 = vpop.f32.mrf.mxu0
        %v617 = vadd.f32 %v506, %v616
        %v618 = vpop.f32.mrf.mxu0
        %v619 = vadd.f32 %v508, %v618
        %620 = vmatmul.bf16.gmra.mxu0 %v593
        %v621 = vpop.f32.mrf.mxu0
        %v622 = vadd.f32 %v511, %v621
        %v623 = vpop.f32.mrf.mxu0
        %v624 = vadd.f32 %v513, %v623
        %625 = vmatmul.bf16.gmra.mxu0 %v596
        %v626 = vpop.f32.mrf.mxu0
        %v627 = vadd.f32 %v516, %v626
        %v628 = vpop.f32.mrf.mxu0
        %v629 = vadd.f32 %v518, %v628
        %630 = vmatmul.bf16.gmra.mxu0 %v599
        %v631 = vpop.f32.mrf.mxu0
        %v632 = vadd.f32 %v521, %v631
        %v633 = vpop.f32.mrf.mxu0
        %v634 = vadd.f32 %v523, %v633
        %635 = vmatmul.bf16.gmra.mxu0 %v602
        %v636 = vpop.f32.mrf.mxu0
        %v637 = vadd.f32 %v526, %v636
        %v638 = vpop.f32.mrf.mxu0
        %v639 = vadd.f32 %v528, %v638
        %640 = vmatmul.bf16.gmra.mxu0 %v605
        %v641 = vpop.f32.mrf.mxu0
        %v642 = vadd.f32 %v531, %v641
        %v643 = vpop.f32.mrf.mxu0
        %v644 = vadd.f32 %v533, %v643
        %645 = vdwg.mxu0
        %s646 = scalar_lea.vmem %s351, 8 [#allocation4]
        %v647 = vld [vmem:[%s646] sm:$0xf]
        %v648 = vld [vmem:[%s646 + $0x4] sm:$0xf]
        %v649 = vld [vmem:[%s646 + $0x8] sm:$0xf]
        %v650 = vld [vmem:[%s646 + $0xc] sm:$0xf]
        %v651 = vld [vmem:[%s646 + $0x10] sm:$0xf]
        %v652 = vld [vmem:[%s646 + $0x14] sm:$0xf]
        %v653 = vld [vmem:[%s646 + $0x18] sm:$0xf]
        %v654 = vld [vmem:[%s646 + $0x1c] sm:$0xf]
        %v655 = vld [vmem:[%s646 + $0x20] sm:$0xf]
        %v656 = vld [vmem:[%s646 + $0x24] sm:$0xf]
        %v657 = vld [vmem:[%s646 + $0x28] sm:$0xf]
        %v658 = vld [vmem:[%s646 + $0x2c] sm:$0xf]
        %s659 = scalar_lea.vmem %s1, 64
        %v660 = vld [vmem:[%s659] sm:$0xf]
        %v661 = vld [vmem:[%s659 + $0x4] sm:$0xf]
        %v662 = vld [vmem:[%s659 + $0x8] sm:$0xf]
        %v663 = vld [vmem:[%s659 + $0xc] sm:$0xf]
        %v664 = vld [vmem:[%s659 + $0x10] sm:$0xf]
        %v665 = vld [vmem:[%s659 + $0x14] sm:$0xf]
        %v666 = vld [vmem:[%s659 + $0x18] sm:$0xf]
        %v667 = vld [vmem:[%s659 + $0x1c] sm:$0xf]
        %v680 = vunpack.c.l.b16 %v647
        %v681 = vunpack.c.l.b16 %v648
        %v682 = vunpack.c.l.b16 %v649
        %v683 = vunpack.c.l.b16 %v650
        %v684 = vunpack.c.l.b16 %v651
        %v685 = vunpack.c.l.b16 %v652
        %v686 = vunpack.c.l.b16 %v653
        %v687 = vunpack.c.l.b16 %v654
        %v688 = vunpack.c.l.b16 %v655
        %v689 = vunpack.c.l.b16 %v656
        %v690 = vunpack.c.l.b16 %v657
        %v691 = vunpack.c.l.b16 %v658
        %v692 = vpack.c.b16 %v681, %v680
        %v693 = vpack.c.b16 %v683, %v682
        %v694 = vpack.c.b16 %v685, %v684
        %v695 = vpack.c.b16 %v687, %v686
        %v696 = vpack.c.b16 %v689, %v688
        %v697 = vpack.c.b16 %v691, %v690
        %v706 = vunpack.c.l.b16 %v660
        %v707 = vunpack.c.l.b16 %v661
        %v708 = vunpack.c.l.b16 %v662
        %v709 = vunpack.c.l.b16 %v663
        %v710 = vunpack.c.l.b16 %v664
        %v711 = vunpack.c.l.b16 %v665
        %v712 = vunpack.c.l.b16 %v666
        %v713 = vunpack.c.l.b16 %v667
        %v714 = vpack.c.b16 %v707, %v706
        %v715 = vpack.c.b16 %v709, %v708
        %v716 = vpack.c.b16 %v711, %v710
        %v717 = vpack.c.b16 %v713, %v712
        %v723 = vsel %vm477, %v692, 0
        %v726 = vsel %vm477, %v693, 0
        %v729 = vsel %vm477, %v694, 0
        %v732 = vsel %vm477, %v695, 0
        %v735 = vsel %vm477, %v696, 0
        %v738 = vsel %vm477, %v697, 0
        %740 = vmatpush.bf16.msra.mxu0 0
        %741 = vmatpush.bf16.msra.mxu0 0
        %742 = vmatpush.bf16.msra.mxu0 0
        %743 = vmatpush.bf16.msra.mxu0 0
        %744 = vmatpush.bf16.msra.mxu0 %v717
        %745 = vmatpush.bf16.msra.mxu0 %v716
        %746 = vmatpush.bf16.msra.mxu0 %v715
        %747 = vmatpush.bf16.msra.mxu0 %v714
        %748 = vmatmul.bf16.gmra.mxu0 %v723
        %v749 = vpop.f32.mrf.mxu0
        %v750 = vadd.f32 0.0, %v749
        %v751 = vpop.f32.mrf.mxu0
        %v752 = vadd.f32 0.0, %v751
        %753 = vmatmul.bf16.gmra.mxu0 %v726
        %v754 = vpop.f32.mrf.mxu0
        %v755 = vadd.f32 0.0, %v754
        %v756 = vpop.f32.mrf.mxu0
        %v757 = vadd.f32 0.0, %v756
        %758 = vmatmul.bf16.gmra.mxu0 %v729
        %v759 = vpop.f32.mrf.mxu0
        %v760 = vadd.f32 0.0, %v759
        %v761 = vpop.f32.mrf.mxu0
        %v762 = vadd.f32 0.0, %v761
        %763 = vmatmul.bf16.gmra.mxu0 %v732
        %v764 = vpop.f32.mrf.mxu0
        %v765 = vadd.f32 0.0, %v764
        %v766 = vpop.f32.mrf.mxu0
        %v767 = vadd.f32 0.0, %v766
        %768 = vmatmul.bf16.gmra.mxu0 %v735
        %v769 = vpop.f32.mrf.mxu0
        %v770 = vadd.f32 0.0, %v769
        %v771 = vpop.f32.mrf.mxu0
        %v772 = vadd.f32 0.0, %v771
        %773 = vmatmul.bf16.gmra.mxu0 %v738
        %v774 = vpop.f32.mrf.mxu0
        %v775 = vadd.f32 0.0, %v774
        %v776 = vpop.f32.mrf.mxu0
        %v777 = vadd.f32 0.0, %v776
        %778 = vdwg.mxu0
        %v779 = vadd.f32 %v617, %v750
        %v780 = vadd.f32 %v619, %v752
        %v781 = vadd.f32 %v622, %v755
        %v782 = vadd.f32 %v624, %v757
        %v783 = vadd.f32 %v627, %v760
        %v784 = vadd.f32 %v629, %v762
        %v785 = vadd.f32 %v632, %v765
        %v786 = vadd.f32 %v634, %v767
        %v787 = vadd.f32 %v637, %v770
        %v788 = vadd.f32 %v639, %v772
        %v789 = vadd.f32 %v642, %v775
        %v790 = vadd.f32 %v644, %v777
        %s791 = scalar_lea.vmem %s351, 12 [#allocation4]
        %v792 = vld [vmem:[%s791] sm:$0xf]
        %v793 = vld [vmem:[%s791 + $0x4] sm:$0xf]
        %v794 = vld [vmem:[%s791 + $0x8] sm:$0xf]
        %v795 = vld [vmem:[%s791 + $0xc] sm:$0xf]
        %v796 = vld [vmem:[%s791 + $0x10] sm:$0xf]
        %v797 = vld [vmem:[%s791 + $0x14] sm:$0xf]
        %v798 = vld [vmem:[%s791 + $0x18] sm:$0xf]
        %v799 = vld [vmem:[%s791 + $0x1c] sm:$0xf]
        %v800 = vld [vmem:[%s791 + $0x20] sm:$0xf]
        %v801 = vld [vmem:[%s791 + $0x24] sm:$0xf]
        %v802 = vld [vmem:[%s791 + $0x28] sm:$0xf]
        %v803 = vld [vmem:[%s791 + $0x2c] sm:$0xf]
        %s804 = scalar_lea.vmem %s1, 96
        %v805 = vld [vmem:[%s804] sm:$0xf]
        %v806 = vld [vmem:[%s804 + $0x4] sm:$0xf]
        %v807 = vld [vmem:[%s804 + $0x8] sm:$0xf]
        %v808 = vld [vmem:[%s804 + $0xc] sm:$0xf]
        %v809 = vld [vmem:[%s804 + $0x10] sm:$0xf]
        %v810 = vld [vmem:[%s804 + $0x14] sm:$0xf]
        %v811 = vld [vmem:[%s804 + $0x18] sm:$0xf]
        %v812 = vld [vmem:[%s804 + $0x1c] sm:$0xf]
        %v825 = vunpack.c.l.b16 %v792
        %v826 = vunpack.c.l.b16 %v793
        %v827 = vunpack.c.l.b16 %v794
        %v828 = vunpack.c.l.b16 %v795
        %v829 = vunpack.c.l.b16 %v796
        %v830 = vunpack.c.l.b16 %v797
        %v831 = vunpack.c.l.b16 %v798
        %v832 = vunpack.c.l.b16 %v799
        %v833 = vunpack.c.l.b16 %v800
        %v834 = vunpack.c.l.b16 %v801
        %v835 = vunpack.c.l.b16 %v802
        %v836 = vunpack.c.l.b16 %v803
        %v837 = vpack.c.b16 %v826, %v825
        %v838 = vpack.c.b16 %v828, %v827
        %v839 = vpack.c.b16 %v830, %v829
        %v840 = vpack.c.b16 %v832, %v831
        %v841 = vpack.c.b16 %v834, %v833
        %v842 = vpack.c.b16 %v836, %v835
        %v851 = vunpack.c.l.b16 %v805
        %v852 = vunpack.c.l.b16 %v806
        %v853 = vunpack.c.l.b16 %v807
        %v854 = vunpack.c.l.b16 %v808
        %v855 = vunpack.c.l.b16 %v809
        %v856 = vunpack.c.l.b16 %v810
        %v857 = vunpack.c.l.b16 %v811
        %v858 = vunpack.c.l.b16 %v812
        %v859 = vpack.c.b16 %v852, %v851
        %v860 = vpack.c.b16 %v854, %v853
        %v861 = vpack.c.b16 %v856, %v855
        %v862 = vpack.c.b16 %v858, %v857
        %v868 = vsel %vm477, %v837, 0
        %v871 = vsel %vm477, %v838, 0
        %v874 = vsel %vm477, %v839, 0
        %v877 = vsel %vm477, %v840, 0
        %v880 = vsel %vm477, %v841, 0
        %v883 = vsel %vm477, %v842, 0
        %885 = vmatpush.bf16.msra.mxu0 0
        %886 = vmatpush.bf16.msra.mxu0 0
        %887 = vmatpush.bf16.msra.mxu0 0
        %888 = vmatpush.bf16.msra.mxu0 0
        %889 = vmatpush.bf16.msra.mxu0 %v862
        %890 = vmatpush.bf16.msra.mxu0 %v861
        %891 = vmatpush.bf16.msra.mxu0 %v860
        %892 = vmatpush.bf16.msra.mxu0 %v859
        %893 = vmatmul.bf16.gmra.mxu0 %v868
        %v894 = vpop.f32.mrf.mxu0
        %v895 = vadd.f32 0.0, %v894
        %v896 = vpop.f32.mrf.mxu0
        %v897 = vadd.f32 0.0, %v896
        %898 = vmatmul.bf16.gmra.mxu0 %v871
        %v899 = vpop.f32.mrf.mxu0
        %v900 = vadd.f32 0.0, %v899
        %v901 = vpop.f32.mrf.mxu0
        %v902 = vadd.f32 0.0, %v901
        %903 = vmatmul.bf16.gmra.mxu0 %v874
        %v904 = vpop.f32.mrf.mxu0
        %v905 = vadd.f32 0.0, %v904
        %v906 = vpop.f32.mrf.mxu0
        %v907 = vadd.f32 0.0, %v906
        %908 = vmatmul.bf16.gmra.mxu0 %v877
        %v909 = vpop.f32.mrf.mxu0
        %v910 = vadd.f32 0.0, %v909
        %v911 = vpop.f32.mrf.mxu0
        %v912 = vadd.f32 0.0, %v911
        %913 = vmatmul.bf16.gmra.mxu0 %v880
        %v914 = vpop.f32.mrf.mxu0
        %v915 = vadd.f32 0.0, %v914
        %v916 = vpop.f32.mrf.mxu0
        %v917 = vadd.f32 0.0, %v916
        %918 = vmatmul.bf16.gmra.mxu0 %v883
        %v919 = vpop.f32.mrf.mxu0
        %v920 = vadd.f32 0.0, %v919
        %v921 = vpop.f32.mrf.mxu0
        %v922 = vadd.f32 0.0, %v921
        %923 = vdwg.mxu0
        %v924 = vadd.f32 %v779, %v895
        %v925 = vadd.f32 %v780, %v897
        %v926 = vadd.f32 %v781, %v900
        %v927 = vadd.f32 %v782, %v902
        %v928 = vadd.f32 %v783, %v905
        %v929 = vadd.f32 %v784, %v907
        %v930 = vadd.f32 %v785, %v910
        %v931 = vadd.f32 %v786, %v912
        %v932 = vadd.f32 %v787, %v915
        %v933 = vadd.f32 %v788, %v917
        %v934 = vadd.f32 %v789, %v920
        %v935 = vadd.f32 %v790, %v922
        %s936 = scalar_lea.vmem %s351, 16 [#allocation4]
        %v937 = vld [vmem:[%s936] sm:$0xf]
        %v938 = vld [vmem:[%s936 + $0x4] sm:$0xf]
        %v939 = vld [vmem:[%s936 + $0x8] sm:$0xf]
        %v940 = vld [vmem:[%s936 + $0xc] sm:$0xf]
        %v941 = vld [vmem:[%s936 + $0x10] sm:$0xf]
        %v942 = vld [vmem:[%s936 + $0x14] sm:$0xf]
        %v943 = vld [vmem:[%s936 + $0x18] sm:$0xf]
        %v944 = vld [vmem:[%s936 + $0x1c] sm:$0xf]
        %v945 = vld [vmem:[%s936 + $0x20] sm:$0xf]
        %v946 = vld [vmem:[%s936 + $0x24] sm:$0xf]
        %v947 = vld [vmem:[%s936 + $0x28] sm:$0xf]
        %v948 = vld [vmem:[%s936 + $0x2c] sm:$0xf]
        %s949 = scalar_lea.vmem %s1, 128
        %v950 = vld [vmem:[%s949] sm:$0xf]
        %v951 = vld [vmem:[%s949 + $0x4] sm:$0xf]
        %v952 = vld [vmem:[%s949 + $0x8] sm:$0xf]
        %v953 = vld [vmem:[%s949 + $0xc] sm:$0xf]
        %v954 = vld [vmem:[%s949 + $0x10] sm:$0xf]
        %v955 = vld [vmem:[%s949 + $0x14] sm:$0xf]
        %v956 = vld [vmem:[%s949 + $0x18] sm:$0xf]
        %v957 = vld [vmem:[%s949 + $0x1c] sm:$0xf]
        %v970 = vunpack.c.l.b16 %v937
        %v971 = vunpack.c.l.b16 %v938
        %v972 = vunpack.c.l.b16 %v939
        %v973 = vunpack.c.l.b16 %v940
        %v974 = vunpack.c.l.b16 %v941
        %v975 = vunpack.c.l.b16 %v942
        %v976 = vunpack.c.l.b16 %v943
        %v977 = vunpack.c.l.b16 %v944
        %v978 = vunpack.c.l.b16 %v945
        %v979 = vunpack.c.l.b16 %v946
        %v980 = vunpack.c.l.b16 %v947
        %v981 = vunpack.c.l.b16 %v948
        %v982 = vpack.c.b16 %v971, %v970
        %v983 = vpack.c.b16 %v973, %v972
        %v984 = vpack.c.b16 %v975, %v974
        %v985 = vpack.c.b16 %v977, %v976
        %v986 = vpack.c.b16 %v979, %v978
        %v987 = vpack.c.b16 %v981, %v980
        %v996 = vunpack.c.l.b16 %v950
        %v997 = vunpack.c.l.b16 %v951
        %v998 = vunpack.c.l.b16 %v952
        %v999 = vunpack.c.l.b16 %v953
        %v1000 = vunpack.c.l.b16 %v954
        %v1001 = vunpack.c.l.b16 %v955
        %v1002 = vunpack.c.l.b16 %v956
        %v1003 = vunpack.c.l.b16 %v957
        %v1004 = vpack.c.b16 %v997, %v996
        %v1005 = vpack.c.b16 %v999, %v998
        %v1006 = vpack.c.b16 %v1001, %v1000
        %v1007 = vpack.c.b16 %v1003, %v1002
        %v1013 = vsel %vm477, %v982, 0
        %v1016 = vsel %vm477, %v983, 0
        %v1019 = vsel %vm477, %v984, 0
        %v1022 = vsel %vm477, %v985, 0
        %v1025 = vsel %vm477, %v986, 0
        %v1028 = vsel %vm477, %v987, 0
        %1030 = vmatpush.bf16.msra.mxu0 0
        %1031 = vmatpush.bf16.msra.mxu0 0
        %1032 = vmatpush.bf16.msra.mxu0 0
        %1033 = vmatpush.bf16.msra.mxu0 0
        %1034 = vmatpush.bf16.msra.mxu0 %v1007
        %1035 = vmatpush.bf16.msra.mxu0 %v1006
        %1036 = vmatpush.bf16.msra.mxu0 %v1005
        %1037 = vmatpush.bf16.msra.mxu0 %v1004
        %1038 = vmatmul.bf16.gmra.mxu0 %v1013
        %v1039 = vpop.f32.mrf.mxu0
        %v1040 = vadd.f32 0.0, %v1039
        %v1041 = vpop.f32.mrf.mxu0
        %v1042 = vadd.f32 0.0, %v1041
        %1043 = vmatmul.bf16.gmra.mxu0 %v1016
        %v1044 = vpop.f32.mrf.mxu0
        %v1045 = vadd.f32 0.0, %v1044
        %v1046 = vpop.f32.mrf.mxu0
        %v1047 = vadd.f32 0.0, %v1046
        %1048 = vmatmul.bf16.gmra.mxu0 %v1019
        %v1049 = vpop.f32.mrf.mxu0
        %v1050 = vadd.f32 0.0, %v1049
        %v1051 = vpop.f32.mrf.mxu0
        %v1052 = vadd.f32 0.0, %v1051
        %1053 = vmatmul.bf16.gmra.mxu0 %v1022
        %v1054 = vpop.f32.mrf.mxu0
        %v1055 = vadd.f32 0.0, %v1054
        %v1056 = vpop.f32.mrf.mxu0
        %v1057 = vadd.f32 0.0, %v1056
        %1058 = vmatmul.bf16.gmra.mxu0 %v1025
        %v1059 = vpop.f32.mrf.mxu0
        %v1060 = vadd.f32 0.0, %v1059
        %v1061 = vpop.f32.mrf.mxu0
        %v1062 = vadd.f32 0.0, %v1061
        %1063 = vmatmul.bf16.gmra.mxu0 %v1028
        %v1064 = vpop.f32.mrf.mxu0
        %v1065 = vadd.f32 0.0, %v1064
        %v1066 = vpop.f32.mrf.mxu0
        %v1067 = vadd.f32 0.0, %v1066
        %1068 = vdwg.mxu0
        %v1069 = vadd.f32 %v924, %v1040
        %v1070 = vadd.f32 %v925, %v1042
        %v1071 = vadd.f32 %v926, %v1045
        %v1072 = vadd.f32 %v927, %v1047
        %v1073 = vadd.f32 %v928, %v1050
        %v1074 = vadd.f32 %v929, %v1052
        %v1075 = vadd.f32 %v930, %v1055
        %v1076 = vadd.f32 %v931, %v1057
        %v1077 = vadd.f32 %v932, %v1060
        %v1078 = vadd.f32 %v933, %v1062
        %v1079 = vadd.f32 %v934, %v1065
        %v1080 = vadd.f32 %v935, %v1067
        %v1081 = vld [vmem:[%s2] sm:$0x1]
        %v1083 = vperm.slane %v1081, 0
        %v1085 = vadd.f32 %v1069, %v1083
        %v1086 = vadd.f32 %v1070, %v1083
        %v1087 = vadd.f32 %v1071, %v1083
        %v1088 = vadd.f32 %v1072, %v1083
        %v1089 = vadd.f32 %v1073, %v1083
        %v1090 = vadd.f32 %v1074, %v1083
        %v1091 = vadd.f32 %v1075, %v1083
        %v1092 = vadd.f32 %v1076, %v1083
        %v1093 = vadd.f32 %v1077, %v1083
        %v1094 = vadd.f32 %v1078, %v1083
        %v1095 = vadd.f32 %v1079, %v1083
        %v1096 = vadd.f32 %v1080, %v1083
        %v1097 = vmax.f32 %v1085, 0.0
        %v1098 = vmax.f32 %v1086, 0.0
        %v1099 = vmax.f32 %v1087, 0.0
        %v1100 = vmax.f32 %v1088, 0.0
        %v1101 = vmax.f32 %v1089, 0.0
        %v1102 = vmax.f32 %v1090, 0.0
        %v1103 = vmax.f32 %v1091, 0.0
        %v1104 = vmax.f32 %v1092, 0.0
        %v1105 = vmax.f32 %v1093, 0.0
        %v1106 = vmax.f32 %v1094, 0.0
        %v1107 = vmax.f32 %v1095, 0.0
        %v1108 = vmax.f32 %v1096, 0.0
        %v1109 = vpack.c.bf16 %v1097, %v1097
        %v1110 = vpack.c.bf16 %v1098, %v1098
        %v1111 = vpack.c.bf16 %v1099, %v1099
        %v1112 = vpack.c.bf16 %v1100, %v1100
        %v1113 = vpack.c.bf16 %v1101, %v1101
        %v1114 = vpack.c.bf16 %v1102, %v1102
        %v1115 = vpack.c.bf16 %v1103, %v1103
        %v1116 = vpack.c.bf16 %v1104, %v1104
        %v1117 = vpack.c.bf16 %v1105, %v1105
        %v1118 = vpack.c.bf16 %v1106, %v1106
        %v1119 = vpack.c.bf16 %v1107, %v1107
        %v1120 = vpack.c.bf16 %v1108, %v1108
        %vm1121 = vcmask 781312
        %1122 = vst.msk [vmem:[#allocation2] sm:$0xf] %vm1121, %v1109
        %1123 = vst.msk [vmem:[#allocation2 + $0x4] sm:$0xf] %vm1121, %v1110
        %1124 = vst.msk [vmem:[#allocation2 + $0x8] sm:$0xf] %vm1121, %v1111
        %1125 = vst.msk [vmem:[#allocation2 + $0xc] sm:$0xf] %vm1121, %v1112
        %1126 = vst.msk [vmem:[#allocation2 + $0x10] sm:$0xf] %vm1121, %v1113
        %1127 = vst.msk [vmem:[#allocation2 + $0x14] sm:$0xf] %vm1121, %v1114
        %1128 = vst.msk [vmem:[#allocation2 + $0x18] sm:$0xf] %vm1121, %v1115
        %1129 = vst.msk [vmem:[#allocation2 + $0x1c] sm:$0xf] %vm1121, %v1116
        %1130 = vst.msk [vmem:[#allocation2 + $0x20] sm:$0xf] %vm1121, %v1117
        %1131 = vst.msk [vmem:[#allocation2 + $0x24] sm:$0xf] %vm1121, %v1118
        %1132 = vst.msk [vmem:[#allocation2 + $0x28] sm:$0xf] %vm1121, %v1119
        %1133 = vst.msk [vmem:[#allocation2 + $0x2c] sm:$0xf] %vm1121, %v1120
        %v1134 = vld [vmem:[#allocation2] sm:$0xf]
        %v1135 = vld [vmem:[#allocation2 + $0x4] sm:$0xf]
        %v1136 = vld [vmem:[#allocation2 + $0x8] sm:$0xf]
        %v1137 = vld [vmem:[#allocation2 + $0xc] sm:$0xf]
        %v1138 = vld [vmem:[#allocation2 + $0x10] sm:$0xf]
        %v1139 = vld [vmem:[#allocation2 + $0x14] sm:$0xf]
        %v1140 = vld [vmem:[#allocation2 + $0x18] sm:$0xf]
        %v1141 = vld [vmem:[#allocation2 + $0x1c] sm:$0xf]
        %v1142 = vld [vmem:[%s3] sm:$0xf]
        %v1143 = vld [vmem:[%s3 + $0x4] sm:$0xf]
        %v1144 = vld [vmem:[%s3 + $0x8] sm:$0xf]
        %v1145 = vld [vmem:[%s3 + $0xc] sm:$0xf]
        %v1146 = vld [vmem:[%s3 + $0x10] sm:$0xf]
        %v1147 = vld [vmem:[%s3 + $0x14] sm:$0xf]
        %v1148 = vld [vmem:[%s3 + $0x18] sm:$0xf]
        %v1149 = vld [vmem:[%s3 + $0x1c] sm:$0xf]
        %v1150 = vld [vmem:[%s3 + $0x20] sm:$0xf]
        %v1151 = vld [vmem:[%s3 + $0x24] sm:$0xf]
        %v1152 = vld [vmem:[%s3 + $0x28] sm:$0xf]
        %v1153 = vld [vmem:[%s3 + $0x2c] sm:$0xf]
        %s1154 = scalar_lea.vmem [#allocation2], 4
        %v1155 = vld [vmem:[%s1154] sm:$0xf]
        %v1156 = vld [vmem:[%s1154 + $0x4] sm:$0xf]
        %v1157 = vld [vmem:[%s1154 + $0x8] sm:$0xf]
        %v1158 = vld [vmem:[%s1154 + $0xc] sm:$0xf]
        %v1159 = vld [vmem:[%s1154 + $0x10] sm:$0xf]
        %v1160 = vld [vmem:[%s1154 + $0x14] sm:$0xf]
        %v1161 = vld [vmem:[%s1154 + $0x18] sm:$0xf]
        %v1162 = vld [vmem:[%s1154 + $0x1c] sm:$0xf]
        %s1163 = scalar_lea.vmem %s3, 48
        %v1164 = vld [vmem:[%s1163] sm:$0xf]
        %v1165 = vld [vmem:[%s1163 + $0x4] sm:$0xf]
        %v1166 = vld [vmem:[%s1163 + $0x8] sm:$0xf]
        %v1167 = vld [vmem:[%s1163 + $0xc] sm:$0xf]
        %v1168 = vld [vmem:[%s1163 + $0x10] sm:$0xf]
        %v1169 = vld [vmem:[%s1163 + $0x14] sm:$0xf]
        %v1170 = vld [vmem:[%s1163 + $0x18] sm:$0xf]
        %v1171 = vld [vmem:[%s1163 + $0x1c] sm:$0xf]
        %v1172 = vld [vmem:[%s1163 + $0x20] sm:$0xf]
        %v1173 = vld [vmem:[%s1163 + $0x24] sm:$0xf]
        %v1174 = vld [vmem:[%s1163 + $0x28] sm:$0xf]
        %v1175 = vld [vmem:[%s1163 + $0x2c] sm:$0xf]
        %v1184 = vunpack.c.l.b16 %v1155
        %v1185 = vunpack.c.l.b16 %v1156
        %v1186 = vunpack.c.l.b16 %v1157
        %v1187 = vunpack.c.l.b16 %v1158
        %v1188 = vunpack.c.l.b16 %v1159
        %v1189 = vunpack.c.l.b16 %v1160
        %v1190 = vunpack.c.l.b16 %v1161
        %v1191 = vunpack.c.l.b16 %v1162
        %v1192 = vpack.c.b16 %v1185, %v1184
        %v1193 = vpack.c.b16 %v1187, %v1186
        %v1194 = vpack.c.b16 %v1189, %v1188
        %v1195 = vpack.c.b16 %v1191, %v1190
        %v1208 = vunpack.c.l.b16 %v1164
        %v1209 = vunpack.c.l.b16 %v1165
        %v1210 = vunpack.c.l.b16 %v1166
        %v1211 = vunpack.c.l.b16 %v1167
        %v1212 = vunpack.c.l.b16 %v1168
        %v1213 = vunpack.c.l.b16 %v1169
        %v1214 = vunpack.c.l.b16 %v1170
        %v1215 = vunpack.c.l.b16 %v1171
        %v1216 = vunpack.c.l.b16 %v1172
        %v1217 = vunpack.c.l.b16 %v1173
        %v1218 = vunpack.c.l.b16 %v1174
        %v1219 = vunpack.c.l.b16 %v1175
        %v1220 = vpack.c.b16 %v1209, %v1208
        %v1221 = vpack.c.b16 %v1211, %v1210
        %v1222 = vpack.c.b16 %v1213, %v1212
        %v1223 = vpack.c.b16 %v1215, %v1214
        %v1224 = vpack.c.b16 %v1217, %v1216
        %v1225 = vpack.c.b16 %v1219, %v1218
        %vm1232 = vcmask 785408
        %v1234 = vsel %vm1232, %v1192, 0
        %v1237 = vsel %vm1232, %v1193, 0
        %v1240 = vsel %vm1232, %v1194, 0
        %v1243 = vsel %vm1232, %v1195, 0
        %1245 = vmatpush.bf16.msra.mxu0 0
        %1246 = vmatpush.bf16.msra.mxu0 0
        %1247 = vmatpush.bf16.msra.mxu0 %v1225
        %1248 = vmatpush.bf16.msra.mxu0 %v1224
        %1249 = vmatpush.bf16.msra.mxu0 %v1223
        %1250 = vmatpush.bf16.msra.mxu0 %v1222
        %1251 = vmatpush.bf16.msra.mxu0 %v1221
        %1252 = vmatpush.bf16.msra.mxu0 %v1220
        %1253 = vmatmul.bf16.gmra.mxu0 %v1234
        %v1254 = vpop.f32.mrf.mxu0
        %v1255 = vadd.f32 0.0, %v1254
        %v1256 = vpop.f32.mrf.mxu0
        %v1257 = vadd.f32 0.0, %v1256
        %1258 = vmatmul.bf16.gmra.mxu0 %v1237
        %v1259 = vpop.f32.mrf.mxu0
        %v1260 = vadd.f32 0.0, %v1259
        %v1261 = vpop.f32.mrf.mxu0
        %v1262 = vadd.f32 0.0, %v1261
        %1263 = vmatmul.bf16.gmra.mxu0 %v1240
        %v1264 = vpop.f32.mrf.mxu0
        %v1265 = vadd.f32 0.0, %v1264
        %v1266 = vpop.f32.mrf.mxu0
        %v1267 = vadd.f32 0.0, %v1266
        %1268 = vmatmul.bf16.gmra.mxu0 %v1243
        %v1269 = vpop.f32.mrf.mxu0
        %v1270 = vadd.f32 0.0, %v1269
        %v1271 = vpop.f32.mrf.mxu0
        %v1272 = vadd.f32 0.0, %v1271
        %1273 = vdwg.mxu0
        %v1282 = vunpack.c.l.b16 %v1134
        %v1283 = vunpack.c.l.b16 %v1135
        %v1284 = vunpack.c.l.b16 %v1136
        %v1285 = vunpack.c.l.b16 %v1137
        %v1286 = vunpack.c.l.b16 %v1138
        %v1287 = vunpack.c.l.b16 %v1139
        %v1288 = vunpack.c.l.b16 %v1140
        %v1289 = vunpack.c.l.b16 %v1141
        %v1290 = vpack.c.b16 %v1283, %v1282
        %v1291 = vpack.c.b16 %v1285, %v1284
        %v1292 = vpack.c.b16 %v1287, %v1286
        %v1293 = vpack.c.b16 %v1289, %v1288
        %v1306 = vunpack.c.l.b16 %v1142
        %v1307 = vunpack.c.l.b16 %v1143
        %v1308 = vunpack.c.l.b16 %v1144
        %v1309 = vunpack.c.l.b16 %v1145
        %v1310 = vunpack.c.l.b16 %v1146
        %v1311 = vunpack.c.l.b16 %v1147
        %v1312 = vunpack.c.l.b16 %v1148
        %v1313 = vunpack.c.l.b16 %v1149
        %v1314 = vunpack.c.l.b16 %v1150
        %v1315 = vunpack.c.l.b16 %v1151
        %v1316 = vunpack.c.l.b16 %v1152
        %v1317 = vunpack.c.l.b16 %v1153
        %v1318 = vpack.c.b16 %v1307, %v1306
        %v1319 = vpack.c.b16 %v1309, %v1308
        %v1320 = vpack.c.b16 %v1311, %v1310
        %v1321 = vpack.c.b16 %v1313, %v1312
        %v1322 = vpack.c.b16 %v1315, %v1314
        %v1323 = vpack.c.b16 %v1317, %v1316
        %v1331 = vsel %vm1232, %v1290, 0
        %v1334 = vsel %vm1232, %v1291, 0
        %v1337 = vsel %vm1232, %v1292, 0
        %v1340 = vsel %vm1232, %v1293, 0
        %1342 = vmatpush.bf16.msra.mxu0 0
        %1343 = vmatpush.bf16.msra.mxu0 0
        %1344 = vmatpush.bf16.msra.mxu0 %v1323
        %1345 = vmatpush.bf16.msra.mxu0 %v1322
        %1346 = vmatpush.bf16.msra.mxu0 %v1321
        %1347 = vmatpush.bf16.msra.mxu0 %v1320
        %1348 = vmatpush.bf16.msra.mxu0 %v1319
        %1349 = vmatpush.bf16.msra.mxu0 %v1318
        %1350 = vmatmul.bf16.gmra.mxu0 %v1331
        %v1351 = vpop.f32.mrf.mxu0
        %v1352 = vadd.f32 %v1255, %v1351
        %v1353 = vpop.f32.mrf.mxu0
        %v1354 = vadd.f32 %v1257, %v1353
        %1355 = vmatmul.bf16.gmra.mxu0 %v1334
        %v1356 = vpop.f32.mrf.mxu0
        %v1357 = vadd.f32 %v1260, %v1356
        %v1358 = vpop.f32.mrf.mxu0
        %v1359 = vadd.f32 %v1262, %v1358
        %1360 = vmatmul.bf16.gmra.mxu0 %v1337
        %v1361 = vpop.f32.mrf.mxu0
        %v1362 = vadd.f32 %v1265, %v1361
        %v1363 = vpop.f32.mrf.mxu0
        %v1364 = vadd.f32 %v1267, %v1363
        %1365 = vmatmul.bf16.gmra.mxu0 %v1340
        %v1366 = vpop.f32.mrf.mxu0
        %v1367 = vadd.f32 %v1270, %v1366
        %v1368 = vpop.f32.mrf.mxu0
        %v1369 = vadd.f32 %v1272, %v1368
        %1370 = vdwg.mxu0
        %s1371 = scalar_lea.vmem [#allocation2], 8
        %v1372 = vld [vmem:[%s1371] sm:$0xf]
        %v1373 = vld [vmem:[%s1371 + $0x4] sm:$0xf]
        %v1374 = vld [vmem:[%s1371 + $0x8] sm:$0xf]
        %v1375 = vld [vmem:[%s1371 + $0xc] sm:$0xf]
        %v1376 = vld [vmem:[%s1371 + $0x10] sm:$0xf]
        %v1377 = vld [vmem:[%s1371 + $0x14] sm:$0xf]
        %v1378 = vld [vmem:[%s1371 + $0x18] sm:$0xf]
        %v1379 = vld [vmem:[%s1371 + $0x1c] sm:$0xf]
        %s1380 = scalar_lea.vmem %s3, 96
        %v1381 = vld [vmem:[%s1380] sm:$0xf]
        %v1382 = vld [vmem:[%s1380 + $0x4] sm:$0xf]
        %v1383 = vld [vmem:[%s1380 + $0x8] sm:$0xf]
        %v1384 = vld [vmem:[%s1380 + $0xc] sm:$0xf]
        %v1385 = vld [vmem:[%s1380 + $0x10] sm:$0xf]
        %v1386 = vld [vmem:[%s1380 + $0x14] sm:$0xf]
        %v1387 = vld [vmem:[%s1380 + $0x18] sm:$0xf]
        %v1388 = vld [vmem:[%s1380 + $0x1c] sm:$0xf]
        %v1389 = vld [vmem:[%s1380 + $0x20] sm:$0xf]
        %v1390 = vld [vmem:[%s1380 + $0x24] sm:$0xf]
        %v1391 = vld [vmem:[%s1380 + $0x28] sm:$0xf]
        %v1392 = vld [vmem:[%s1380 + $0x2c] sm:$0xf]
        %v1401 = vunpack.c.l.b16 %v1372
        %v1402 = vunpack.c.l.b16 %v1373
        %v1403 = vunpack.c.l.b16 %v1374
        %v1404 = vunpack.c.l.b16 %v1375
        %v1405 = vunpack.c.l.b16 %v1376
        %v1406 = vunpack.c.l.b16 %v1377
        %v1407 = vunpack.c.l.b16 %v1378
        %v1408 = vunpack.c.l.b16 %v1379
        %v1409 = vpack.c.b16 %v1402, %v1401
        %v1410 = vpack.c.b16 %v1404, %v1403
        %v1411 = vpack.c.b16 %v1406, %v1405
        %v1412 = vpack.c.b16 %v1408, %v1407
        %v1425 = vunpack.c.l.b16 %v1381
        %v1426 = vunpack.c.l.b16 %v1382
        %v1427 = vunpack.c.l.b16 %v1383
        %v1428 = vunpack.c.l.b16 %v1384
        %v1429 = vunpack.c.l.b16 %v1385
        %v1430 = vunpack.c.l.b16 %v1386
        %v1431 = vunpack.c.l.b16 %v1387
        %v1432 = vunpack.c.l.b16 %v1388
        %v1433 = vunpack.c.l.b16 %v1389
        %v1434 = vunpack.c.l.b16 %v1390
        %v1435 = vunpack.c.l.b16 %v1391
        %v1436 = vunpack.c.l.b16 %v1392
        %v1437 = vpack.c.b16 %v1426, %v1425
        %v1438 = vpack.c.b16 %v1428, %v1427
        %v1439 = vpack.c.b16 %v1430, %v1429
        %v1440 = vpack.c.b16 %v1432, %v1431
        %v1441 = vpack.c.b16 %v1434, %v1433
        %v1442 = vpack.c.b16 %v1436, %v1435
        %v1450 = vsel %vm1232, %v1409, 0
        %v1453 = vsel %vm1232, %v1410, 0
        %v1456 = vsel %vm1232, %v1411, 0
        %v1459 = vsel %vm1232, %v1412, 0
        %1461 = vmatpush.bf16.msra.mxu0 0
        %1462 = vmatpush.bf16.msra.mxu0 0
        %1463 = vmatpush.bf16.msra.mxu0 %v1442
        %1464 = vmatpush.bf16.msra.mxu0 %v1441
        %1465 = vmatpush.bf16.msra.mxu0 %v1440
        %1466 = vmatpush.bf16.msra.mxu0 %v1439
        %1467 = vmatpush.bf16.msra.mxu0 %v1438
        %1468 = vmatpush.bf16.msra.mxu0 %v1437
        %1469 = vmatmul.bf16.gmra.mxu0 %v1450
        %v1470 = vpop.f32.mrf.mxu0
        %v1471 = vadd.f32 0.0, %v1470
        %v1472 = vpop.f32.mrf.mxu0
        %v1473 = vadd.f32 0.0, %v1472
        %1474 = vmatmul.bf16.gmra.mxu0 %v1453
        %v1475 = vpop.f32.mrf.mxu0
        %v1476 = vadd.f32 0.0, %v1475
        %v1477 = vpop.f32.mrf.mxu0
        %v1478 = vadd.f32 0.0, %v1477
        %1479 = vmatmul.bf16.gmra.mxu0 %v1456
        %v1480 = vpop.f32.mrf.mxu0
        %v1481 = vadd.f32 0.0, %v1480
        %v1482 = vpop.f32.mrf.mxu0
        %v1483 = vadd.f32 0.0, %v1482
        %1484 = vmatmul.bf16.gmra.mxu0 %v1459
        %v1485 = vpop.f32.mrf.mxu0
        %v1486 = vadd.f32 0.0, %v1485
        %v1487 = vpop.f32.mrf.mxu0
        %v1488 = vadd.f32 0.0, %v1487
        %1489 = vdwg.mxu0
        %v1490 = vadd.f32 %v1352, %v1471
        %v1491 = vadd.f32 %v1354, %v1473
        %v1492 = vadd.f32 %v1357, %v1476
        %v1493 = vadd.f32 %v1359, %v1478
        %v1494 = vadd.f32 %v1362, %v1481
        %v1495 = vadd.f32 %v1364, %v1483
        %v1496 = vadd.f32 %v1367, %v1486
        %v1497 = vadd.f32 %v1369, %v1488
        %s1498 = scalar_lea.vmem [#allocation2], 12
        %v1499 = vld [vmem:[%s1498] sm:$0xf]
        %v1500 = vld [vmem:[%s1498 + $0x4] sm:$0xf]
        %v1501 = vld [vmem:[%s1498 + $0x8] sm:$0xf]
        %v1502 = vld [vmem:[%s1498 + $0xc] sm:$0xf]
        %v1503 = vld [vmem:[%s1498 + $0x10] sm:$0xf]
        %v1504 = vld [vmem:[%s1498 + $0x14] sm:$0xf]
        %v1505 = vld [vmem:[%s1498 + $0x18] sm:$0xf]
        %v1506 = vld [vmem:[%s1498 + $0x1c] sm:$0xf]
        %s1507 = scalar_lea.vmem %s3, 144
        %v1508 = vld [vmem:[%s1507] sm:$0xf]
        %v1509 = vld [vmem:[%s1507 + $0x4] sm:$0xf]
        %v1510 = vld [vmem:[%s1507 + $0x8] sm:$0xf]
        %v1511 = vld [vmem:[%s1507 + $0xc] sm:$0xf]
        %v1512 = vld [vmem:[%s1507 + $0x10] sm:$0xf]
        %v1513 = vld [vmem:[%s1507 + $0x14] sm:$0xf]
        %v1514 = vld [vmem:[%s1507 + $0x18] sm:$0xf]
        %v1515 = vld [vmem:[%s1507 + $0x1c] sm:$0xf]
        %v1516 = vld [vmem:[%s1507 + $0x20] sm:$0xf]
        %v1517 = vld [vmem:[%s1507 + $0x24] sm:$0xf]
        %v1518 = vld [vmem:[%s1507 + $0x28] sm:$0xf]
        %v1519 = vld [vmem:[%s1507 + $0x2c] sm:$0xf]
        %v1528 = vunpack.c.l.b16 %v1499
        %v1529 = vunpack.c.l.b16 %v1500
        %v1530 = vunpack.c.l.b16 %v1501
        %v1531 = vunpack.c.l.b16 %v1502
        %v1532 = vunpack.c.l.b16 %v1503
        %v1533 = vunpack.c.l.b16 %v1504
        %v1534 = vunpack.c.l.b16 %v1505
        %v1535 = vunpack.c.l.b16 %v1506
        %v1536 = vpack.c.b16 %v1529, %v1528
        %v1537 = vpack.c.b16 %v1531, %v1530
        %v1538 = vpack.c.b16 %v1533, %v1532
        %v1539 = vpack.c.b16 %v1535, %v1534
        %v1552 = vunpack.c.l.b16 %v1508
        %v1553 = vunpack.c.l.b16 %v1509
        %v1554 = vunpack.c.l.b16 %v1510
        %v1555 = vunpack.c.l.b16 %v1511
        %v1556 = vunpack.c.l.b16 %v1512
        %v1557 = vunpack.c.l.b16 %v1513
        %v1558 = vunpack.c.l.b16 %v1514
        %v1559 = vunpack.c.l.b16 %v1515
        %v1560 = vunpack.c.l.b16 %v1516
        %v1561 = vunpack.c.l.b16 %v1517
        %v1562 = vunpack.c.l.b16 %v1518
        %v1563 = vunpack.c.l.b16 %v1519
        %v1564 = vpack.c.b16 %v1553, %v1552
        %v1565 = vpack.c.b16 %v1555, %v1554
        %v1566 = vpack.c.b16 %v1557, %v1556
        %v1567 = vpack.c.b16 %v1559, %v1558
        %v1568 = vpack.c.b16 %v1561, %v1560
        %v1569 = vpack.c.b16 %v1563, %v1562
        %v1577 = vsel %vm1232, %v1536, 0
        %v1580 = vsel %vm1232, %v1537, 0
        %v1583 = vsel %vm1232, %v1538, 0
        %v1586 = vsel %vm1232, %v1539, 0
        %1588 = vmatpush.bf16.msra.mxu0 0
        %1589 = vmatpush.bf16.msra.mxu0 0
        %1590 = vmatpush.bf16.msra.mxu0 %v1569
        %1591 = vmatpush.bf16.msra.mxu0 %v1568
        %1592 = vmatpush.bf16.msra.mxu0 %v1567
        %1593 = vmatpush.bf16.msra.mxu0 %v1566
        %1594 = vmatpush.bf16.msra.mxu0 %v1565
        %1595 = vmatpush.bf16.msra.mxu0 %v1564
        %1596 = vmatmul.bf16.gmra.mxu0 %v1577
        %v1597 = vpop.f32.mrf.mxu0
        %v1598 = vadd.f32 0.0, %v1597
        %v1599 = vpop.f32.mrf.mxu0
        %v1600 = vadd.f32 0.0, %v1599
        %1601 = vmatmul.bf16.gmra.mxu0 %v1580
        %v1602 = vpop.f32.mrf.mxu0
        %v1603 = vadd.f32 0.0, %v1602
        %v1604 = vpop.f32.mrf.mxu0
        %v1605 = vadd.f32 0.0, %v1604
        %1606 = vmatmul.bf16.gmra.mxu0 %v1583
        %v1607 = vpop.f32.mrf.mxu0
        %v1608 = vadd.f32 0.0, %v1607
        %v1609 = vpop.f32.mrf.mxu0
        %v1610 = vadd.f32 0.0, %v1609
        %1611 = vmatmul.bf16.gmra.mxu0 %v1586
        %v1612 = vpop.f32.mrf.mxu0
        %v1613 = vadd.f32 0.0, %v1612
        %v1614 = vpop.f32.mrf.mxu0
        %v1615 = vadd.f32 0.0, %v1614
        %1616 = vdwg.mxu0
        %v1617 = vadd.f32 %v1490, %v1598
        %v1618 = vadd.f32 %v1491, %v1600
        %v1619 = vadd.f32 %v1492, %v1603
        %v1620 = vadd.f32 %v1493, %v1605
        %v1621 = vadd.f32 %v1494, %v1608
        %v1622 = vadd.f32 %v1495, %v1610
        %v1623 = vadd.f32 %v1496, %v1613
        %v1624 = vadd.f32 %v1497, %v1615
        %s1625 = scalar_lea.vmem [#allocation2], 16
        %v1626 = vld [vmem:[%s1625] sm:$0xf]
        %v1627 = vld [vmem:[%s1625 + $0x4] sm:$0xf]
        %v1628 = vld [vmem:[%s1625 + $0x8] sm:$0xf]
        %v1629 = vld [vmem:[%s1625 + $0xc] sm:$0xf]
        %v1630 = vld [vmem:[%s1625 + $0x10] sm:$0xf]
        %v1631 = vld [vmem:[%s1625 + $0x14] sm:$0xf]
        %v1632 = vld [vmem:[%s1625 + $0x18] sm:$0xf]
        %v1633 = vld [vmem:[%s1625 + $0x1c] sm:$0xf]
        %s1634 = scalar_lea.vmem %s3, 192
        %v1635 = vld [vmem:[%s1634] sm:$0xf]
        %v1636 = vld [vmem:[%s1634 + $0x4] sm:$0xf]
        %v1637 = vld [vmem:[%s1634 + $0x8] sm:$0xf]
        %v1638 = vld [vmem:[%s1634 + $0xc] sm:$0xf]
        %v1639 = vld [vmem:[%s1634 + $0x10] sm:$0xf]
        %v1640 = vld [vmem:[%s1634 + $0x14] sm:$0xf]
        %v1641 = vld [vmem:[%s1634 + $0x18] sm:$0xf]
        %v1642 = vld [vmem:[%s1634 + $0x1c] sm:$0xf]
        %v1643 = vld [vmem:[%s1634 + $0x20] sm:$0xf]
        %v1644 = vld [vmem:[%s1634 + $0x24] sm:$0xf]
        %v1645 = vld [vmem:[%s1634 + $0x28] sm:$0xf]
        %v1646 = vld [vmem:[%s1634 + $0x2c] sm:$0xf]
        %v1655 = vunpack.c.l.b16 %v1626
        %v1656 = vunpack.c.l.b16 %v1627
        %v1657 = vunpack.c.l.b16 %v1628
        %v1658 = vunpack.c.l.b16 %v1629
        %v1659 = vunpack.c.l.b16 %v1630
        %v1660 = vunpack.c.l.b16 %v1631
        %v1661 = vunpack.c.l.b16 %v1632
        %v1662 = vunpack.c.l.b16 %v1633
        %v1663 = vpack.c.b16 %v1656, %v1655
        %v1664 = vpack.c.b16 %v1658, %v1657
        %v1665 = vpack.c.b16 %v1660, %v1659
        %v1666 = vpack.c.b16 %v1662, %v1661
        %v1679 = vunpack.c.l.b16 %v1635
        %v1680 = vunpack.c.l.b16 %v1636
        %v1681 = vunpack.c.l.b16 %v1637
        %v1682 = vunpack.c.l.b16 %v1638
        %v1683 = vunpack.c.l.b16 %v1639
        %v1684 = vunpack.c.l.b16 %v1640
        %v1685 = vunpack.c.l.b16 %v1641
        %v1686 = vunpack.c.l.b16 %v1642
        %v1687 = vunpack.c.l.b16 %v1643
        %v1688 = vunpack.c.l.b16 %v1644
        %v1689 = vunpack.c.l.b16 %v1645
        %v1690 = vunpack.c.l.b16 %v1646
        %v1691 = vpack.c.b16 %v1680, %v1679
        %v1692 = vpack.c.b16 %v1682, %v1681
        %v1693 = vpack.c.b16 %v1684, %v1683
        %v1694 = vpack.c.b16 %v1686, %v1685
        %v1695 = vpack.c.b16 %v1688, %v1687
        %v1696 = vpack.c.b16 %v1690, %v1689
        %v1704 = vsel %vm1232, %v1663, 0
        %v1707 = vsel %vm1232, %v1664, 0
        %v1710 = vsel %vm1232, %v1665, 0
        %v1713 = vsel %vm1232, %v1666, 0
        %1715 = vmatpush.bf16.msra.mxu0 0
        %1716 = vmatpush.bf16.msra.mxu0 0
        %1717 = vmatpush.bf16.msra.mxu0 %v1696
        %1718 = vmatpush.bf16.msra.mxu0 %v1695
        %1719 = vmatpush.bf16.msra.mxu0 %v1694
        %1720 = vmatpush.bf16.msra.mxu0 %v1693
        %1721 = vmatpush.bf16.msra.mxu0 %v1692
        %1722 = vmatpush.bf16.msra.mxu0 %v1691
        %1723 = vmatmul.bf16.gmra.mxu0 %v1704
        %v1724 = vpop.f32.mrf.mxu0
        %v1725 = vadd.f32 0.0, %v1724
        %v1726 = vpop.f32.mrf.mxu0
        %v1727 = vadd.f32 0.0, %v1726
        %1728 = vmatmul.bf16.gmra.mxu0 %v1707
        %v1729 = vpop.f32.mrf.mxu0
        %v1730 = vadd.f32 0.0, %v1729
        %v1731 = vpop.f32.mrf.mxu0
        %v1732 = vadd.f32 0.0, %v1731
        %1733 = vmatmul.bf16.gmra.mxu0 %v1710
        %v1734 = vpop.f32.mrf.mxu0
        %v1735 = vadd.f32 0.0, %v1734
        %v1736 = vpop.f32.mrf.mxu0
        %v1737 = vadd.f32 0.0, %v1736
        %1738 = vmatmul.bf16.gmra.mxu0 %v1713
        %v1739 = vpop.f32.mrf.mxu0
        %v1740 = vadd.f32 0.0, %v1739
        %v1741 = vpop.f32.mrf.mxu0
        %v1742 = vadd.f32 0.0, %v1741
        %1743 = vdwg.mxu0
        %v1744 = vadd.f32 %v1617, %v1725
        %v1745 = vadd.f32 %v1618, %v1727
        %v1746 = vadd.f32 %v1619, %v1730
        %v1747 = vadd.f32 %v1620, %v1732
        %v1748 = vadd.f32 %v1621, %v1735
        %v1749 = vadd.f32 %v1622, %v1737
        %v1750 = vadd.f32 %v1623, %v1740
        %v1751 = vadd.f32 %v1624, %v1742
        %v1752 = vld [vmem:[%s4] sm:$0x1]
        %v1754 = vperm.slane %v1752, 0
        %v1756 = vadd.f32 %v1744, %v1754
        %v1757 = vadd.f32 %v1745, %v1754
        %v1758 = vadd.f32 %v1746, %v1754
        %v1759 = vadd.f32 %v1747, %v1754
        %v1760 = vadd.f32 %v1748, %v1754
        %v1761 = vadd.f32 %v1749, %v1754
        %v1762 = vadd.f32 %v1750, %v1754
        %v1763 = vadd.f32 %v1751, %v1754
        %v1764 = vmax.f32 %v1756, 0.0
        %v1765 = vmax.f32 %v1757, 0.0
        %v1766 = vmax.f32 %v1758, 0.0
        %v1767 = vmax.f32 %v1759, 0.0
        %v1768 = vmax.f32 %v1760, 0.0
        %v1769 = vmax.f32 %v1761, 0.0
        %v1770 = vmax.f32 %v1762, 0.0
        %v1771 = vmax.f32 %v1763, 0.0
        %v1772 = vpack.c.bf16 %v1764, %v1764
        %v1773 = vpack.c.bf16 %v1765, %v1765
        %v1774 = vpack.c.bf16 %v1766, %v1766
        %v1775 = vpack.c.bf16 %v1767, %v1767
        %v1776 = vpack.c.bf16 %v1768, %v1768
        %v1777 = vpack.c.bf16 %v1769, %v1769
        %v1778 = vpack.c.bf16 %v1770, %v1770
        %v1779 = vpack.c.bf16 %v1771, %v1771
        %1780 = vst [vmem:[#allocation3] sm:$0xf] %v1772
        %1781 = vst [vmem:[#allocation3 + $0x4] sm:$0xf] %v1773
        %1782 = vst [vmem:[#allocation3 + $0x8] sm:$0xf] %v1774
        %1783 = vst [vmem:[#allocation3 + $0xc] sm:$0xf] %v1775
        %1784 = vst [vmem:[#allocation3 + $0x10] sm:$0xf] %v1776
        %1785 = vst [vmem:[#allocation3 + $0x14] sm:$0xf] %v1777
        %1786 = vst [vmem:[#allocation3 + $0x18] sm:$0xf] %v1778
        %1787 = vst [vmem:[#allocation3 + $0x1c] sm:$0xf] %v1779
        %v1788 = vld [vmem:[#allocation3] sm:$0xf]
        %v1789 = vld [vmem:[%s5] sm:$0xf]
        %v1790 = vld [vmem:[%s5 + $0x4] sm:$0xf]
        %v1791 = vld [vmem:[%s5 + $0x8] sm:$0xf]
        %v1792 = vld [vmem:[%s5 + $0xc] sm:$0xf]
        %v1793 = vld [vmem:[%s5 + $0x10] sm:$0xf]
        %v1794 = vld [vmem:[%s5 + $0x14] sm:$0xf]
        %v1795 = vld [vmem:[%s5 + $0x18] sm:$0xf]
        %v1796 = vld [vmem:[%s5 + $0x1c] sm:$0xf]
        %v1797 = vld [vmem:[%s5 + $0x20] sm:$0xf]
        %v1798 = vld [vmem:[%s5 + $0x24] sm:$0xf]
        %v1799 = vld [vmem:[%s5 + $0x28] sm:$0xf]
        %v1800 = vld [vmem:[%s5 + $0x2c] sm:$0xf]
        %v1801 = vld [vmem:[%s5 + $0x30] sm:$0xf]
        %v1802 = vld [vmem:[%s5 + $0x34] sm:$0xf]
        %v1803 = vld [vmem:[%s5 + $0x38] sm:$0xf]
        %v1804 = vld [vmem:[%s5 + $0x3c] sm:$0xf]
        %s1805 = scalar_lea.vmem [#allocation3], 4
        %v1806 = vld [vmem:[%s1805] sm:$0xf]
        %s1807 = scalar_lea.vmem %s5, 64
        %v1808 = vld [vmem:[%s1807] sm:$0xf]
        %v1809 = vld [vmem:[%s1807 + $0x4] sm:$0xf]
        %v1810 = vld [vmem:[%s1807 + $0x8] sm:$0xf]
        %v1811 = vld [vmem:[%s1807 + $0xc] sm:$0xf]
        %v1812 = vld [vmem:[%s1807 + $0x10] sm:$0xf]
        %v1813 = vld [vmem:[%s1807 + $0x14] sm:$0xf]
        %v1814 = vld [vmem:[%s1807 + $0x18] sm:$0xf]
        %v1815 = vld [vmem:[%s1807 + $0x1c] sm:$0xf]
        %v1816 = vld [vmem:[%s1807 + $0x20] sm:$0xf]
        %v1817 = vld [vmem:[%s1807 + $0x24] sm:$0xf]
        %v1818 = vld [vmem:[%s1807 + $0x28] sm:$0xf]
        %v1819 = vld [vmem:[%s1807 + $0x2c] sm:$0xf]
        %v1820 = vld [vmem:[%s1807 + $0x30] sm:$0xf]
        %v1821 = vld [vmem:[%s1807 + $0x34] sm:$0xf]
        %v1822 = vld [vmem:[%s1807 + $0x38] sm:$0xf]
        %v1823 = vld [vmem:[%s1807 + $0x3c] sm:$0xf]
        %v1840 = vunpack.c.l.b16 %v1808
        %v1841 = vunpack.c.l.b16 %v1809
        %v1842 = vunpack.c.l.b16 %v1810
        %v1843 = vunpack.c.l.b16 %v1811
        %v1844 = vunpack.c.l.b16 %v1812
        %v1845 = vunpack.c.l.b16 %v1813
        %v1846 = vunpack.c.l.b16 %v1814
        %v1847 = vunpack.c.l.b16 %v1815
        %v1848 = vunpack.c.l.b16 %v1816
        %v1849 = vunpack.c.l.b16 %v1817
        %v1850 = vunpack.c.l.b16 %v1818
        %v1851 = vunpack.c.l.b16 %v1819
        %v1852 = vunpack.c.l.b16 %v1820
        %v1853 = vunpack.c.l.b16 %v1821
        %v1854 = vunpack.c.l.b16 %v1822
        %v1855 = vunpack.c.l.b16 %v1823
        %v1856 = vpack.c.b16 %v1841, %v1840
        %v1857 = vpack.c.b16 %v1843, %v1842
        %v1858 = vpack.c.b16 %v1845, %v1844
        %v1859 = vpack.c.b16 %v1847, %v1846
        %v1860 = vpack.c.b16 %v1849, %v1848
        %v1861 = vpack.c.b16 %v1851, %v1850
        %v1862 = vpack.c.b16 %v1853, %v1852
        %v1863 = vpack.c.b16 %v1855, %v1854
        %1872 = vmatpush.bf16.msra.mxu0 %v1863
        %1873 = vmatpush.bf16.msra.mxu0 %v1862
        %1874 = vmatpush.bf16.msra.mxu0 %v1861
        %1875 = vmatpush.bf16.msra.mxu0 %v1860
        %1876 = vmatpush.bf16.msra.mxu0 %v1859
        %1877 = vmatpush.bf16.msra.mxu0 %v1858
        %1878 = vmatpush.bf16.msra.mxu0 %v1857
        %1879 = vmatpush.bf16.msra.mxu0 %v1856
        %1880 = vmatmul.bf16.gmra.mxu0 %v1806
        %v1881 = vpop.f32.mrf.mxu0
        %v1882 = vadd.f32 0.0, %v1881
        %v1883 = vpop.f32.mrf.mxu0
        %1884 = vdwg.mxu0
        %v1901 = vunpack.c.l.b16 %v1789
        %v1902 = vunpack.c.l.b16 %v1790
        %v1903 = vunpack.c.l.b16 %v1791
        %v1904 = vunpack.c.l.b16 %v1792
        %v1905 = vunpack.c.l.b16 %v1793
        %v1906 = vunpack.c.l.b16 %v1794
        %v1907 = vunpack.c.l.b16 %v1795
        %v1908 = vunpack.c.l.b16 %v1796
        %v1909 = vunpack.c.l.b16 %v1797
        %v1910 = vunpack.c.l.b16 %v1798
        %v1911 = vunpack.c.l.b16 %v1799
        %v1912 = vunpack.c.l.b16 %v1800
        %v1913 = vunpack.c.l.b16 %v1801
        %v1914 = vunpack.c.l.b16 %v1802
        %v1915 = vunpack.c.l.b16 %v1803
        %v1916 = vunpack.c.l.b16 %v1804
        %v1917 = vpack.c.b16 %v1902, %v1901
        %v1918 = vpack.c.b16 %v1904, %v1903
        %v1919 = vpack.c.b16 %v1906, %v1905
        %v1920 = vpack.c.b16 %v1908, %v1907
        %v1921 = vpack.c.b16 %v1910, %v1909
        %v1922 = vpack.c.b16 %v1912, %v1911
        %v1923 = vpack.c.b16 %v1914, %v1913
        %v1924 = vpack.c.b16 %v1916, %v1915
        %1933 = vmatpush.bf16.msra.mxu0 %v1924
        %1934 = vmatpush.bf16.msra.mxu0 %v1923
        %1935 = vmatpush.bf16.msra.mxu0 %v1922
        %1936 = vmatpush.bf16.msra.mxu0 %v1921
        %1937 = vmatpush.bf16.msra.mxu0 %v1920
        %1938 = vmatpush.bf16.msra.mxu0 %v1919
        %1939 = vmatpush.bf16.msra.mxu0 %v1918
        %1940 = vmatpush.bf16.msra.mxu0 %v1917
        %1941 = vmatmul.bf16.gmra.mxu0 %v1788
        %v1942 = vpop.f32.mrf.mxu0
        %v1943 = vadd.f32 %v1882, %v1942
        %v1944 = vpop.f32.mrf.mxu0
        %1945 = vdwg.mxu0
        %s1946 = scalar_lea.vmem [#allocation3], 8
        %v1947 = vld [vmem:[%s1946] sm:$0xf]
        %s1948 = scalar_lea.vmem %s5, 128
        %v1949 = vld [vmem:[%s1948] sm:$0xf]
        %v1950 = vld [vmem:[%s1948 + $0x4] sm:$0xf]
        %v1951 = vld [vmem:[%s1948 + $0x8] sm:$0xf]
        %v1952 = vld [vmem:[%s1948 + $0xc] sm:$0xf]
        %v1953 = vld [vmem:[%s1948 + $0x10] sm:$0xf]
        %v1954 = vld [vmem:[%s1948 + $0x14] sm:$0xf]
        %v1955 = vld [vmem:[%s1948 + $0x18] sm:$0xf]
        %v1956 = vld [vmem:[%s1948 + $0x1c] sm:$0xf]
        %v1957 = vld [vmem:[%s1948 + $0x20] sm:$0xf]
        %v1958 = vld [vmem:[%s1948 + $0x24] sm:$0xf]
        %v1959 = vld [vmem:[%s1948 + $0x28] sm:$0xf]
        %v1960 = vld [vmem:[%s1948 + $0x2c] sm:$0xf]
        %v1961 = vld [vmem:[%s1948 + $0x30] sm:$0xf]
        %v1962 = vld [vmem:[%s1948 + $0x34] sm:$0xf]
        %v1963 = vld [vmem:[%s1948 + $0x38] sm:$0xf]
        %v1964 = vld [vmem:[%s1948 + $0x3c] sm:$0xf]
        %v1981 = vunpack.c.l.b16 %v1949
        %v1982 = vunpack.c.l.b16 %v1950
        %v1983 = vunpack.c.l.b16 %v1951
        %v1984 = vunpack.c.l.b16 %v1952
        %v1985 = vunpack.c.l.b16 %v1953
        %v1986 = vunpack.c.l.b16 %v1954
        %v1987 = vunpack.c.l.b16 %v1955
        %v1988 = vunpack.c.l.b16 %v1956
        %v1989 = vunpack.c.l.b16 %v1957
        %v1990 = vunpack.c.l.b16 %v1958
        %v1991 = vunpack.c.l.b16 %v1959
        %v1992 = vunpack.c.l.b16 %v1960
        %v1993 = vunpack.c.l.b16 %v1961
        %v1994 = vunpack.c.l.b16 %v1962
        %v1995 = vunpack.c.l.b16 %v1963
        %v1996 = vunpack.c.l.b16 %v1964
        %v1997 = vpack.c.b16 %v1982, %v1981
        %v1998 = vpack.c.b16 %v1984, %v1983
        %v1999 = vpack.c.b16 %v1986, %v1985
        %v2000 = vpack.c.b16 %v1988, %v1987
        %v2001 = vpack.c.b16 %v1990, %v1989
        %v2002 = vpack.c.b16 %v1992, %v1991
        %v2003 = vpack.c.b16 %v1994, %v1993
        %v2004 = vpack.c.b16 %v1996, %v1995
        %2013 = vmatpush.bf16.msra.mxu0 %v2004
        %2014 = vmatpush.bf16.msra.mxu0 %v2003
        %2015 = vmatpush.bf16.msra.mxu0 %v2002
        %2016 = vmatpush.bf16.msra.mxu0 %v2001
        %2017 = vmatpush.bf16.msra.mxu0 %v2000
        %2018 = vmatpush.bf16.msra.mxu0 %v1999
        %2019 = vmatpush.bf16.msra.mxu0 %v1998
        %2020 = vmatpush.bf16.msra.mxu0 %v1997
        %2021 = vmatmul.bf16.gmra.mxu0 %v1947
        %v2022 = vpop.f32.mrf.mxu0
        %v2023 = vadd.f32 0.0, %v2022
        %v2024 = vpop.f32.mrf.mxu0
        %2025 = vdwg.mxu0
        %v2026 = vadd.f32 %v1943, %v2023
        %s2027 = scalar_lea.vmem [#allocation3], 12
        %v2028 = vld [vmem:[%s2027] sm:$0xf]
        %s2029 = scalar_lea.vmem %s5, 192
        %v2030 = vld [vmem:[%s2029] sm:$0xf]
        %v2031 = vld [vmem:[%s2029 + $0x4] sm:$0xf]
        %v2032 = vld [vmem:[%s2029 + $0x8] sm:$0xf]
        %v2033 = vld [vmem:[%s2029 + $0xc] sm:$0xf]
        %v2034 = vld [vmem:[%s2029 + $0x10] sm:$0xf]
        %v2035 = vld [vmem:[%s2029 + $0x14] sm:$0xf]
        %v2036 = vld [vmem:[%s2029 + $0x18] sm:$0xf]
        %v2037 = vld [vmem:[%s2029 + $0x1c] sm:$0xf]
        %v2038 = vld [vmem:[%s2029 + $0x20] sm:$0xf]
        %v2039 = vld [vmem:[%s2029 + $0x24] sm:$0xf]
        %v2040 = vld [vmem:[%s2029 + $0x28] sm:$0xf]
        %v2041 = vld [vmem:[%s2029 + $0x2c] sm:$0xf]
        %v2042 = vld [vmem:[%s2029 + $0x30] sm:$0xf]
        %v2043 = vld [vmem:[%s2029 + $0x34] sm:$0xf]
        %v2044 = vld [vmem:[%s2029 + $0x38] sm:$0xf]
        %v2045 = vld [vmem:[%s2029 + $0x3c] sm:$0xf]
        %v2062 = vunpack.c.l.b16 %v2030
        %v2063 = vunpack.c.l.b16 %v2031
        %v2064 = vunpack.c.l.b16 %v2032
        %v2065 = vunpack.c.l.b16 %v2033
        %v2066 = vunpack.c.l.b16 %v2034
        %v2067 = vunpack.c.l.b16 %v2035
        %v2068 = vunpack.c.l.b16 %v2036
        %v2069 = vunpack.c.l.b16 %v2037
        %v2070 = vunpack.c.l.b16 %v2038
        %v2071 = vunpack.c.l.b16 %v2039
        %v2072 = vunpack.c.l.b16 %v2040
        %v2073 = vunpack.c.l.b16 %v2041
        %v2074 = vunpack.c.l.b16 %v2042
        %v2075 = vunpack.c.l.b16 %v2043
        %v2076 = vunpack.c.l.b16 %v2044
        %v2077 = vunpack.c.l.b16 %v2045
        %v2078 = vpack.c.b16 %v2063, %v2062
        %v2079 = vpack.c.b16 %v2065, %v2064
        %v2080 = vpack.c.b16 %v2067, %v2066
        %v2081 = vpack.c.b16 %v2069, %v2068
        %v2082 = vpack.c.b16 %v2071, %v2070
        %v2083 = vpack.c.b16 %v2073, %v2072
        %v2084 = vpack.c.b16 %v2075, %v2074
        %v2085 = vpack.c.b16 %v2077, %v2076
        %2094 = vmatpush.bf16.msra.mxu0 %v2085
        %2095 = vmatpush.bf16.msra.mxu0 %v2084
        %2096 = vmatpush.bf16.msra.mxu0 %v2083
        %2097 = vmatpush.bf16.msra.mxu0 %v2082
        %2098 = vmatpush.bf16.msra.mxu0 %v2081
        %2099 = vmatpush.bf16.msra.mxu0 %v2080
        %2100 = vmatpush.bf16.msra.mxu0 %v2079
        %2101 = vmatpush.bf16.msra.mxu0 %v2078
        %2102 = vmatmul.bf16.gmra.mxu0 %v2028
        %v2103 = vpop.f32.mrf.mxu0
        %v2104 = vadd.f32 0.0, %v2103
        %v2105 = vpop.f32.mrf.mxu0
        %2106 = vdwg.mxu0
        %v2107 = vadd.f32 %v2026, %v2104
        %s2108 = scalar_lea.vmem [#allocation3], 16
        %v2109 = vld [vmem:[%s2108] sm:$0xf]
        %s2110 = scalar_lea.vmem %s5, 256
        %v2111 = vld [vmem:[%s2110] sm:$0xf]
        %v2112 = vld [vmem:[%s2110 + $0x4] sm:$0xf]
        %v2113 = vld [vmem:[%s2110 + $0x8] sm:$0xf]
        %v2114 = vld [vmem:[%s2110 + $0xc] sm:$0xf]
        %v2115 = vld [vmem:[%s2110 + $0x10] sm:$0xf]
        %v2116 = vld [vmem:[%s2110 + $0x14] sm:$0xf]
        %v2117 = vld [vmem:[%s2110 + $0x18] sm:$0xf]
        %v2118 = vld [vmem:[%s2110 + $0x1c] sm:$0xf]
        %v2119 = vld [vmem:[%s2110 + $0x20] sm:$0xf]
        %v2120 = vld [vmem:[%s2110 + $0x24] sm:$0xf]
        %v2121 = vld [vmem:[%s2110 + $0x28] sm:$0xf]
        %v2122 = vld [vmem:[%s2110 + $0x2c] sm:$0xf]
        %v2123 = vld [vmem:[%s2110 + $0x30] sm:$0xf]
        %v2124 = vld [vmem:[%s2110 + $0x34] sm:$0xf]
        %v2125 = vld [vmem:[%s2110 + $0x38] sm:$0xf]
        %v2126 = vld [vmem:[%s2110 + $0x3c] sm:$0xf]
        %v2143 = vunpack.c.l.b16 %v2111
        %v2144 = vunpack.c.l.b16 %v2112
        %v2145 = vunpack.c.l.b16 %v2113
        %v2146 = vunpack.c.l.b16 %v2114
        %v2147 = vunpack.c.l.b16 %v2115
        %v2148 = vunpack.c.l.b16 %v2116
        %v2149 = vunpack.c.l.b16 %v2117
        %v2150 = vunpack.c.l.b16 %v2118
        %v2151 = vunpack.c.l.b16 %v2119
        %v2152 = vunpack.c.l.b16 %v2120
        %v2153 = vunpack.c.l.b16 %v2121
        %v2154 = vunpack.c.l.b16 %v2122
        %v2155 = vunpack.c.l.b16 %v2123
        %v2156 = vunpack.c.l.b16 %v2124
        %v2157 = vunpack.c.l.b16 %v2125
        %v2158 = vunpack.c.l.b16 %v2126
        %v2159 = vpack.c.b16 %v2144, %v2143
        %v2160 = vpack.c.b16 %v2146, %v2145
        %v2161 = vpack.c.b16 %v2148, %v2147
        %v2162 = vpack.c.b16 %v2150, %v2149
        %v2163 = vpack.c.b16 %v2152, %v2151
        %v2164 = vpack.c.b16 %v2154, %v2153
        %v2165 = vpack.c.b16 %v2156, %v2155
        %v2166 = vpack.c.b16 %v2158, %v2157
        %2175 = vmatpush.bf16.msra.mxu0 %v2166
        %2176 = vmatpush.bf16.msra.mxu0 %v2165
        %2177 = vmatpush.bf16.msra.mxu0 %v2164
        %2178 = vmatpush.bf16.msra.mxu0 %v2163
        %2179 = vmatpush.bf16.msra.mxu0 %v2162
        %2180 = vmatpush.bf16.msra.mxu0 %v2161
        %2181 = vmatpush.bf16.msra.mxu0 %v2160
        %2182 = vmatpush.bf16.msra.mxu0 %v2159
        %2183 = vmatmul.bf16.gmra.mxu0 %v2109
        %v2184 = vpop.f32.mrf.mxu0
        %v2185 = vadd.f32 0.0, %v2184
        %v2186 = vpop.f32.mrf.mxu0
        %2187 = vdwg.mxu0
        %v2188 = vadd.f32 %v2107, %v2185
        %s2189 = scalar_lea.vmem [#allocation3], 20
        %v2190 = vld [vmem:[%s2189] sm:$0xf]
        %s2191 = scalar_lea.vmem %s5, 320
        %v2192 = vld [vmem:[%s2191] sm:$0xf]
        %v2193 = vld [vmem:[%s2191 + $0x4] sm:$0xf]
        %v2194 = vld [vmem:[%s2191 + $0x8] sm:$0xf]
        %v2195 = vld [vmem:[%s2191 + $0xc] sm:$0xf]
        %v2196 = vld [vmem:[%s2191 + $0x10] sm:$0xf]
        %v2197 = vld [vmem:[%s2191 + $0x14] sm:$0xf]
        %v2198 = vld [vmem:[%s2191 + $0x18] sm:$0xf]
        %v2199 = vld [vmem:[%s2191 + $0x1c] sm:$0xf]
        %v2200 = vld [vmem:[%s2191 + $0x20] sm:$0xf]
        %v2201 = vld [vmem:[%s2191 + $0x24] sm:$0xf]
        %v2202 = vld [vmem:[%s2191 + $0x28] sm:$0xf]
        %v2203 = vld [vmem:[%s2191 + $0x2c] sm:$0xf]
        %v2204 = vld [vmem:[%s2191 + $0x30] sm:$0xf]
        %v2205 = vld [vmem:[%s2191 + $0x34] sm:$0xf]
        %v2206 = vld [vmem:[%s2191 + $0x38] sm:$0xf]
        %v2207 = vld [vmem:[%s2191 + $0x3c] sm:$0xf]
        %v2224 = vunpack.c.l.b16 %v2192
        %v2225 = vunpack.c.l.b16 %v2193
        %v2226 = vunpack.c.l.b16 %v2194
        %v2227 = vunpack.c.l.b16 %v2195
        %v2228 = vunpack.c.l.b16 %v2196
        %v2229 = vunpack.c.l.b16 %v2197
        %v2230 = vunpack.c.l.b16 %v2198
        %v2231 = vunpack.c.l.b16 %v2199
        %v2232 = vunpack.c.l.b16 %v2200
        %v2233 = vunpack.c.l.b16 %v2201
        %v2234 = vunpack.c.l.b16 %v2202
        %v2235 = vunpack.c.l.b16 %v2203
        %v2236 = vunpack.c.l.b16 %v2204
        %v2237 = vunpack.c.l.b16 %v2205
        %v2238 = vunpack.c.l.b16 %v2206
        %v2239 = vunpack.c.l.b16 %v2207
        %v2240 = vpack.c.b16 %v2225, %v2224
        %v2241 = vpack.c.b16 %v2227, %v2226
        %v2242 = vpack.c.b16 %v2229, %v2228
        %v2243 = vpack.c.b16 %v2231, %v2230
        %v2244 = vpack.c.b16 %v2233, %v2232
        %v2245 = vpack.c.b16 %v2235, %v2234
        %v2246 = vpack.c.b16 %v2237, %v2236
        %v2247 = vpack.c.b16 %v2239, %v2238
        %2256 = vmatpush.bf16.msra.mxu0 %v2247
        %2257 = vmatpush.bf16.msra.mxu0 %v2246
        %2258 = vmatpush.bf16.msra.mxu0 %v2245
        %2259 = vmatpush.bf16.msra.mxu0 %v2244
        %2260 = vmatpush.bf16.msra.mxu0 %v2243
        %2261 = vmatpush.bf16.msra.mxu0 %v2242
        %2262 = vmatpush.bf16.msra.mxu0 %v2241
        %2263 = vmatpush.bf16.msra.mxu0 %v2240
        %2264 = vmatmul.bf16.gmra.mxu0 %v2190
        %v2265 = vpop.f32.mrf.mxu0
        %v2266 = vadd.f32 0.0, %v2265
        %v2267 = vpop.f32.mrf.mxu0
        %2268 = vdwg.mxu0
        %v2269 = vadd.f32 %v2188, %v2266
        %s2270 = scalar_lea.vmem [#allocation3], 24
        %v2271 = vld [vmem:[%s2270] sm:$0xf]
        %s2272 = scalar_lea.vmem %s5, 384
        %v2273 = vld [vmem:[%s2272] sm:$0xf]
        %v2274 = vld [vmem:[%s2272 + $0x4] sm:$0xf]
        %v2275 = vld [vmem:[%s2272 + $0x8] sm:$0xf]
        %v2276 = vld [vmem:[%s2272 + $0xc] sm:$0xf]
        %v2277 = vld [vmem:[%s2272 + $0x10] sm:$0xf]
        %v2278 = vld [vmem:[%s2272 + $0x14] sm:$0xf]
        %v2279 = vld [vmem:[%s2272 + $0x18] sm:$0xf]
        %v2280 = vld [vmem:[%s2272 + $0x1c] sm:$0xf]
        %v2281 = vld [vmem:[%s2272 + $0x20] sm:$0xf]
        %v2282 = vld [vmem:[%s2272 + $0x24] sm:$0xf]
        %v2283 = vld [vmem:[%s2272 + $0x28] sm:$0xf]
        %v2284 = vld [vmem:[%s2272 + $0x2c] sm:$0xf]
        %v2285 = vld [vmem:[%s2272 + $0x30] sm:$0xf]
        %v2286 = vld [vmem:[%s2272 + $0x34] sm:$0xf]
        %v2287 = vld [vmem:[%s2272 + $0x38] sm:$0xf]
        %v2288 = vld [vmem:[%s2272 + $0x3c] sm:$0xf]
        %v2305 = vunpack.c.l.b16 %v2273
        %v2306 = vunpack.c.l.b16 %v2274
        %v2307 = vunpack.c.l.b16 %v2275
        %v2308 = vunpack.c.l.b16 %v2276
        %v2309 = vunpack.c.l.b16 %v2277
        %v2310 = vunpack.c.l.b16 %v2278
        %v2311 = vunpack.c.l.b16 %v2279
        %v2312 = vunpack.c.l.b16 %v2280
        %v2313 = vunpack.c.l.b16 %v2281
        %v2314 = vunpack.c.l.b16 %v2282
        %v2315 = vunpack.c.l.b16 %v2283
        %v2316 = vunpack.c.l.b16 %v2284
        %v2317 = vunpack.c.l.b16 %v2285
        %v2318 = vunpack.c.l.b16 %v2286
        %v2319 = vunpack.c.l.b16 %v2287
        %v2320 = vunpack.c.l.b16 %v2288
        %v2321 = vpack.c.b16 %v2306, %v2305
        %v2322 = vpack.c.b16 %v2308, %v2307
        %v2323 = vpack.c.b16 %v2310, %v2309
        %v2324 = vpack.c.b16 %v2312, %v2311
        %v2325 = vpack.c.b16 %v2314, %v2313
        %v2326 = vpack.c.b16 %v2316, %v2315
        %v2327 = vpack.c.b16 %v2318, %v2317
        %v2328 = vpack.c.b16 %v2320, %v2319
        %2337 = vmatpush.bf16.msra.mxu0 %v2328
        %2338 = vmatpush.bf16.msra.mxu0 %v2327
        %2339 = vmatpush.bf16.msra.mxu0 %v2326
        %2340 = vmatpush.bf16.msra.mxu0 %v2325
        %2341 = vmatpush.bf16.msra.mxu0 %v2324
        %2342 = vmatpush.bf16.msra.mxu0 %v2323
        %2343 = vmatpush.bf16.msra.mxu0 %v2322
        %2344 = vmatpush.bf16.msra.mxu0 %v2321
        %2345 = vmatmul.bf16.gmra.mxu0 %v2271
        %v2346 = vpop.f32.mrf.mxu0
        %v2347 = vadd.f32 0.0, %v2346
        %v2348 = vpop.f32.mrf.mxu0
        %2349 = vdwg.mxu0
        %v2350 = vadd.f32 %v2269, %v2347
        %s2351 = scalar_lea.vmem [#allocation3], 28
        %v2352 = vld [vmem:[%s2351] sm:$0xf]
        %s2353 = scalar_lea.vmem %s5, 448
        %v2354 = vld [vmem:[%s2353] sm:$0xf]
        %v2355 = vld [vmem:[%s2353 + $0x4] sm:$0xf]
        %v2356 = vld [vmem:[%s2353 + $0x8] sm:$0xf]
        %v2357 = vld [vmem:[%s2353 + $0xc] sm:$0xf]
        %v2358 = vld [vmem:[%s2353 + $0x10] sm:$0xf]
        %v2359 = vld [vmem:[%s2353 + $0x14] sm:$0xf]
        %v2360 = vld [vmem:[%s2353 + $0x18] sm:$0xf]
        %v2361 = vld [vmem:[%s2353 + $0x1c] sm:$0xf]
        %v2362 = vld [vmem:[%s2353 + $0x20] sm:$0xf]
        %v2363 = vld [vmem:[%s2353 + $0x24] sm:$0xf]
        %v2364 = vld [vmem:[%s2353 + $0x28] sm:$0xf]
        %v2365 = vld [vmem:[%s2353 + $0x2c] sm:$0xf]
        %v2366 = vld [vmem:[%s2353 + $0x30] sm:$0xf]
        %v2367 = vld [vmem:[%s2353 + $0x34] sm:$0xf]
        %v2368 = vld [vmem:[%s2353 + $0x38] sm:$0xf]
        %v2369 = vld [vmem:[%s2353 + $0x3c] sm:$0xf]
        %v2386 = vunpack.c.l.b16 %v2354
        %v2387 = vunpack.c.l.b16 %v2355
        %v2388 = vunpack.c.l.b16 %v2356
        %v2389 = vunpack.c.l.b16 %v2357
        %v2390 = vunpack.c.l.b16 %v2358
        %v2391 = vunpack.c.l.b16 %v2359
        %v2392 = vunpack.c.l.b16 %v2360
        %v2393 = vunpack.c.l.b16 %v2361
        %v2394 = vunpack.c.l.b16 %v2362
        %v2395 = vunpack.c.l.b16 %v2363
        %v2396 = vunpack.c.l.b16 %v2364
        %v2397 = vunpack.c.l.b16 %v2365
        %v2398 = vunpack.c.l.b16 %v2366
        %v2399 = vunpack.c.l.b16 %v2367
        %v2400 = vunpack.c.l.b16 %v2368
        %v2401 = vunpack.c.l.b16 %v2369
        %v2402 = vpack.c.b16 %v2387, %v2386
        %v2403 = vpack.c.b16 %v2389, %v2388
        %v2404 = vpack.c.b16 %v2391, %v2390
        %v2405 = vpack.c.b16 %v2393, %v2392
        %v2406 = vpack.c.b16 %v2395, %v2394
        %v2407 = vpack.c.b16 %v2397, %v2396
        %v2408 = vpack.c.b16 %v2399, %v2398
        %v2409 = vpack.c.b16 %v2401, %v2400
        %2418 = vmatpush.bf16.msra.mxu0 %v2409
        %2419 = vmatpush.bf16.msra.mxu0 %v2408
        %2420 = vmatpush.bf16.msra.mxu0 %v2407
        %2421 = vmatpush.bf16.msra.mxu0 %v2406
        %2422 = vmatpush.bf16.msra.mxu0 %v2405
        %2423 = vmatpush.bf16.msra.mxu0 %v2404
        %2424 = vmatpush.bf16.msra.mxu0 %v2403
        %2425 = vmatpush.bf16.msra.mxu0 %v2402
        %2426 = vmatmul.bf16.gmra.mxu0 %v2352
        %v2427 = vpop.f32.mrf.mxu0
        %v2428 = vadd.f32 0.0, %v2427
        %v2429 = vpop.f32.mrf.mxu0
        %2430 = vdwg.mxu0
        %v2431 = vadd.f32 %v2350, %v2428
        %v2432 = vld [vmem:[%s6] sm:$0x1]
        %v2434 = vperm.slane %v2432, 0
        %v2436 = vadd.f32 %v2431, %v2434
        %2437 = vst [vmem:[%s379] sm:$0xff] %v2436
        %s2438 = sand.u32 %s181, 1
        %s2439 = scalar_lea.sflag [#allocation6], %s2438
        %s2440 = sand.u32 %s181, 1
        %s2441 = smul.addr %s2440, 8
        %s2442 = scalar_lea.vmem [#allocation5], %s2441
        // Predicated region
        $region90: #{encoder_forward.1} parent=84 // pred_check
          %p2443 = pneg %p191
        $region91: #{encoder_forward.1} parent=84 // pred_check_branch
          %2445 = sbr.rel (%p2443) target = $region93
        $region92: #{encoder_forward.1} parent=84 // pred_region
          %2447 = vsyncadd %s2439, 0
          %s2448 = smul.addr %s21, 8
          %s2449 = scalar_lea.hbm %s7, %s2448
          %s2451 = sshll.u32 %s2442, 4
          %s2452 = int_to_ptr.vmem [resolvable:$true] %s2451
          %s2453 = sshll.u32 %s2449, 4
          %s2454 = int_to_ptr.hbm [resolvable:$true] %s2453
          %2456 = dma.vmem_to_hbm [thread:$0]  %s2452, 128, %s2454, %s2439
        $region93: #{encoder_forward.1} parent=84 // pred_fallthru
          _
      $region85: #{encoder_forward.1} parent=5 // pred_fallthru
        _
      %p2457 = scmp.le.s32.totalorder 2, %s16
      // Predicated region
      $region94: #{encoder_forward.1} parent=5 // pred_check
        %p2458 = pneg %p2457
      $region95: #{encoder_forward.1} parent=5 // pred_check_branch
        %2460 = sbr.rel (%p2458) target = $region97
      $region96: #{encoder_forward.1} parent=5 // pred_region
        %s2461 = ssub.s32 %s16, 2
        // Predicated region
        $region98: #{encoder_forward.1} parent=96 // pred_check
          %p2462 = pneg %p197
        $region99: #{encoder_forward.1} parent=96 // pred_check_branch
          %2464 = sbr.rel (%p2462) target = $region101
        $region100: #{encoder_forward.1} parent=96 // pred_region
          %s2465 = sand.u32 %s182, 1
          %s2466 = scalar_lea.sflag [#allocation6], %s2465
          %s2467 = sand.u32 %s182, 1
          %s2468 = smul.addr %s2467, 8
          %s2469 = scalar_lea.vmem [#allocation5], %s2468
          %2471 = dma.done %s2466, 128
        $region101: #{encoder_forward.1} parent=96 // pred_fallthru
          _
      $region97: #{encoder_forward.1} parent=5 // pred_fallthru
        _
    $region6: #{encoder_forward.1} parent=1 // loop_footer
      %s20 = sadd.s32 1, %s16
    $region7: #{encoder_forward.1} parent=1 // loop_footer_branch
      %15 = sbr.rel target = $region3
    $region8: #{encoder_forward.1} parent=1 // loop_exit
      _
    %2472 = vsyncpa [#allocation6], 1
    %s2473 = scalar_lea.sflag [#allocation6], 1
    %2474 = vsyncpa %s2473, 1

</llo_original>
